<compile_context>
chip_gen: v7x
topology: tpu7x:2x2x1
jax: 0.10.0
libtpu: 0.0.40
codegen_flags: <defaults>
</compile_context>

<pallas_src>
import functools

import jax
import jax.numpy as jnp
from jax import lax
from jax.experimental import pallas as pl
from jax.experimental.pallas import tpu as pltpu


def _fused_block_kernel(*refs, k, dil, L, has_downsample):
    # refs (has_downsample=True):  x, w1, b1, w2, b2, wd, bd, o
    # refs (has_downsample=False): x, w1, b1, w2, b2, o
    if has_downsample:
        x_ref, w1_ref, b1_ref, w2_ref, b2_ref, wd_ref, bd_ref, o_ref = refs
    else:
        x_ref, w1_ref, b1_ref, w2_ref, b2_ref, o_ref = refs

    P = (k - 1) * dil
    x_f32 = x_ref[0]                       # (C_in, L) f32 residual source
    x_bf = x_f32.astype(jnp.bfloat16)      # bf16 MXU operand

    def stacked_taps(v):
        # v: (C, L) bf16 -> (k*C, L) bf16, row block j holds v shifted by
        # (k-1-j)*dil with causal (left-only) zero padding.  Equivalent to
        # Conv1d(padding=P, dilation=dil) followed by Chomp1d(P).
        if P > 0:
            zpad = jnp.zeros((v.shape[0], P), v.dtype)
            vp = jnp.concatenate([zpad, v], axis=-1)          # (C, L+P)
        else:
            vp = v
        return jnp.concatenate(
            [vp[:, j * dil: j * dil + L] for j in range(k)], axis=0)

    # conv1 -> chomp -> ReLU : single (C_out, k*C_in) x (k*C_in, L) MXU matmul
    h = jnp.dot(w1_ref[...], stacked_taps(x_bf),
                preferred_element_type=jnp.float32) + b1_ref[...]
    h = jnp.maximum(h, 0.0)                # (C_out, L) f32, never leaves VMEM

    # conv2 -> chomp -> ReLU
    out = jnp.dot(w2_ref[...], stacked_taps(h.astype(jnp.bfloat16)),
                  preferred_element_type=jnp.float32) + b2_ref[...]
    out = jnp.maximum(out, 0.0)

    # residual (1x1 conv or identity) + final ReLU, f32
    if has_downsample:
        res = jnp.dot(wd_ref[...], x_bf,
                      preferred_element_type=jnp.float32) + bd_ref[...]
    else:
        res = x_f32
    o_ref[0] = jnp.maximum(out + res, 0.0)


def temporal_block(x, p, kernel_size, dilation):
    """One fused TemporalBlock as a single pallas_call."""
    N, C_in, L = x.shape
    k = kernel_size
    C_out = p["b1"].shape[0]
    has_ds = "wd" in p

    in_specs = [
        pl.BlockSpec((1, C_in, L), lambda n: (n, 0, 0)),
        pl.BlockSpec((C_out, k * C_in), lambda n: (0, 0)),
        pl.BlockSpec((C_out, 1), lambda n: (0, 0)),
        pl.BlockSpec((C_out, k * C_out), lambda n: (0, 0)),
        pl.BlockSpec((C_out, 1), lambda n: (0, 0)),
    ]
    args = [x, p["w1"], p["b1"], p["w2"], p["b2"]]
    if has_ds:
        in_specs += [
            pl.BlockSpec((C_out, C_in), lambda n: (0, 0)),
            pl.BlockSpec((C_out, 1), lambda n: (0, 0)),
        ]
        args += [p["wd"], p["bd"]]

    return pl.pallas_call(
        functools.partial(_fused_block_kernel, k=k, dil=dilation, L=L,
                          has_downsample=has_ds),
        out_shape=jax.ShapeDtypeStruct((N, C_out, L), jnp.float32),
        grid=(N,),
        in_specs=in_specs,
        out_specs=pl.BlockSpec((1, C_out, L), lambda n: (n, 0, 0)),
        compiler_params=pltpu.CompilerParams(dimension_semantics=("parallel",)),
    )(*args)


def temporal_conv_net(x, params, kernel_size=2):
    for i, p in enumerate(params):
        x = temporal_block(x, p, kernel_size, dilation=2 ** i)
    return x


# ---- parameter construction -------------------------------------------------
def init_block_params(key, n_in, n_out, k):
    """Canonical (PyTorch Conv1d-layout) f32 parameters: w = (C_out, C_in, k)."""
    ks = jax.random.split(key, 6)
    p = {
        "w1": 0.01 * jax.random.normal(ks[0], (n_out, n_in, k), jnp.float32),
        "b1": 0.01 * jax.random.normal(ks[1], (n_out, 1), jnp.float32),
        "w2": 0.01 * jax.random.normal(ks[2], (n_out, n_out, k), jnp.float32),
        "b2": 0.01 * jax.random.normal(ks[3], (n_out, 1), jnp.float32),
    }
    if n_in != n_out:   # downsample is None in PyTorch when equal -> identity residual
        p["wd"] = 0.01 * jax.random.normal(ks[4], (n_out, n_in), jnp.float32)
        p["bd"] = 0.01 * jax.random.normal(ks[5], (n_out, 1), jnp.float32)
    return p


def init_tcn_params(key, num_inputs, num_channels, k):
    params = []
    for i, n_out in enumerate(num_channels):
        key, sub = jax.random.split(key)
        n_in = num_inputs if i == 0 else num_channels[i - 1]
        params.append(init_block_params(sub, n_in, n_out, k))
    return params


def pack_block_params(p, k):
    """Pack conv weights for the kernel: (C_out, C_in, k) -> bf16 (C_out, k*C_in),
    columns ordered (tap, channel) to match the stacked (k*C_in, L) operand."""
    def pack_w(w):
        co = w.shape[0]
        return jnp.transpose(w, (0, 2, 1)).reshape(co, -1).astype(jnp.bfloat16)
    q = {"w1": pack_w(p["w1"]), "b1": p["b1"],
         "w2": pack_w(p["w2"]), "b2": p["b2"]}
    if "wd" in p:
        q["wd"] = p["wd"].astype(jnp.bfloat16)
        q["bd"] = p["bd"]
    return q


# ---- pure-JAX reference (correctness check only) ----------------------------
def _ref_block(x, p, k, d):
    P = (k - 1) * d
    dn = ("NCH", "OIH", "NCH")
    c1 = lax.conv_general_dilated(x, p["w1"], (1,), [(P, 0)], rhs_dilation=(d,),
                                  dimension_numbers=dn) + p["b1"][None]
    h = jnp.maximum(c1, 0.0)
    c2 = lax.conv_general_dilated(h, p["w2"], (1,), [(P, 0)], rhs_dilation=(d,),
                                  dimension_numbers=dn) + p["b2"][None]
    out = jnp.maximum(c2, 0.0)
    if "wd" in p:
        res = jnp.einsum("oc,ncl->nol", p["wd"], x) + p["bd"][None]
    else:
        res = x
    return jnp.maximum(out + res, 0.0)


def _ref_tcn(x, params, k):
    for i, p in enumerate(params):
        x = _ref_block(x, p, k, 2 ** i)
    return x


if __name__ == "__main__":
    key = jax.random.PRNGKey(0)
    kx, kp = jax.random.split(key)

    batch, num_inputs, length = 2, 4, 128       # L multiple of 128 -> lane-dense stores
    num_channels = [16, 16, 8]                  # exercises downsample + identity residual
    kernel_size = 3

    x = jax.random.normal(kx, (batch, num_inputs, length), jnp.float32)
    params = init_tcn_params(kp, num_inputs, num_channels, kernel_size)
    packed = [pack_block_params(p, kernel_size) for p in params]

    fwd = jax.jit(functools.partial(temporal_conv_net, kernel_size=kernel_size))
    y = jax.block_until_ready(fwd(x, packed))

    y_ref = jax.block_until_ready(_ref_tcn(x, params, kernel_size))
    assert y.shape == (batch, num_channels[-1], length)
    # bf16 MXU operands (f32 accumulation) -> slightly looser tolerance than pure f32.
    assert jnp.allclose(y, y_ref, atol=2e-2, rtol=2e-2), \
        float(jnp.max(jnp.abs(y - y_ref)))

    print("KERNEL_OK")
</pallas_src>

<mosaic_0001>
module attributes {stable_mosaic.version = 11 : i64} {
  func.func @_fused_block_kernel(%arg0: i32, %arg1: memref<1x4x128xf32, #tpu.memory_space<vmem>>, %arg2: memref<16x12xbf16, #tpu.memory_space<vmem>>, %arg3: memref<16x1xf32, #tpu.memory_space<vmem>>, %arg4: memref<16x48xbf16, #tpu.memory_space<vmem>>, %arg5: memref<16x1xf32, #tpu.memory_space<vmem>>, %arg6: memref<16x4xbf16, #tpu.memory_space<vmem>>, %arg7: memref<16x1xf32, #tpu.memory_space<vmem>>, %arg8: memref<1x16x128xf32, #tpu.memory_space<vmem>>) attributes {dimension_semantics = [#tpu.dimension_semantics<parallel>], iteration_bounds = array<i64: 2>, scalar_prefetch = 0 : i64, scratch_operands = 0 : i64, tpu.core_type = #tpu.core_type<tc>, window_params = [{transform_indices = @transform_0, window_bounds = array<i64: 1, 4, 128>}, {pipeline_mode = #tpu.pipeline_mode<synchronous>, transform_indices = @transform_1, window_bounds = array<i64: 16, 12>}, {pipeline_mode = #tpu.pipeline_mode<synchronous>, transform_indices = @transform_2, window_bounds = array<i64: 16, 1>}, {pipeline_mode = #tpu.pipeline_mode<synchronous>, transform_indices = @transform_3, window_bounds = array<i64: 16, 48>}, {pipeline_mode = #tpu.pipeline_mode<synchronous>, transform_indices = @transform_4, window_bounds = array<i64: 16, 1>}, {pipeline_mode = #tpu.pipeline_mode<synchronous>, transform_indices = @transform_5, window_bounds = array<i64: 16, 4>}, {pipeline_mode = #tpu.pipeline_mode<synchronous>, transform_indices = @transform_6, window_bounds = array<i64: 16, 1>}, {transform_indices = @transform_7, window_bounds = array<i64: 1, 16, 128>}]} {
    %c0 = arith.constant 0 : index
    %c0_0 = arith.constant 0 : index
    %c0_1 = arith.constant 0 : index
    %0 = vector.load %arg1[%c0, %c0_0, %c0_1] : memref<1x4x128xf32, #tpu.memory_space<vmem>>, vector<1x4x128xf32>
    %1 = vector.shape_cast %0 : vector<1x4x128xf32> to vector<4x128xf32>
    %2 = arith.truncf %1 : vector<4x128xf32> to vector<4x128xbf16>
    %c0_2 = arith.constant 0 : index
    %c0_3 = arith.constant 0 : index
    %3 = vector.load %arg2[%c0_2, %c0_3] : memref<16x12xbf16, #tpu.memory_space<vmem>>, vector<16x12xbf16>
    %cst = arith.constant 0.000000e+00 : bf16
    %4 = vector.broadcast %cst : bf16 to vector<4x2xbf16>
    %5 = tpu.concatenate %4, %2 in 1 : vector<4x2xbf16>, vector<4x128xbf16> -> vector<4x130xbf16>
    %6 = vector.extract_strided_slice %5 {offsets = [0, 0], sizes = [4, 128], strides = [1, 1]} : vector<4x130xbf16> to vector<4x128xbf16>
    %7 = vector.extract_strided_slice %5 {offsets = [0, 1], sizes = [4, 128], strides = [1, 1]} : vector<4x130xbf16> to vector<4x128xbf16>
    %8 = vector.extract_strided_slice %5 {offsets = [0, 2], sizes = [4, 128], strides = [1, 1]} : vector<4x130xbf16> to vector<4x128xbf16>
    %9 = tpu.concatenate %6, %7, %8 in 0 : vector<4x128xbf16>, vector<4x128xbf16>, vector<4x128xbf16> -> vector<12x128xbf16>
    %cst_4 = arith.constant dense<0.000000e+00> : vector<16x128xf32>
    %10 = tpu.matmul %3, %9, %cst_4 {dimension_numbers = #tpu.dot_dimension_numbers<[1], [0], [0], [1], [0, 0, 1, 1], [], []>} : vector<16x12xbf16>, vector<12x128xbf16>, vector<16x128xf32> -> vector<16x128xf32>
    %c0_5 = arith.constant 0 : index
    %c0_6 = arith.constant 0 : index
    %11 = vector.load %arg3[%c0_5, %c0_6] : memref<16x1xf32, #tpu.memory_space<vmem>>, vector<16x1xf32>
    %12 = vector.broadcast %11 : vector<16x1xf32> to vector<16x128xf32>
    %13 = arith.addf %10, %12 : vector<16x128xf32>
    %cst_7 = arith.constant 0.000000e+00 : f32
    %14 = vector.broadcast %cst_7 : f32 to vector<16x128xf32>
    %15 = arith.maximumf %13, %14 : vector<16x128xf32>
    %c0_8 = arith.constant 0 : index
    %c0_9 = arith.constant 0 : index
    %16 = vector.load %arg4[%c0_8, %c0_9] : memref<16x48xbf16, #tpu.memory_space<vmem>>, vector<16x48xbf16>
    %17 = arith.truncf %15 : vector<16x128xf32> to vector<16x128xbf16>
    %cst_10 = arith.constant 0.000000e+00 : bf16
    %18 = vector.broadcast %cst_10 : bf16 to vector<16x2xbf16>
    %19 = tpu.concatenate %18, %17 in 1 : vector<16x2xbf16>, vector<16x128xbf16> -> vector<16x130xbf16>
    %20 = vector.extract_strided_slice %19 {offsets = [0, 0], sizes = [16, 128], strides = [1, 1]} : vector<16x130xbf16> to vector<16x128xbf16>
    %21 = vector.extract_strided_slice %19 {offsets = [0, 1], sizes = [16, 128], strides = [1, 1]} : vector<16x130xbf16> to vector<16x128xbf16>
    %22 = vector.extract_strided_slice %19 {offsets = [0, 2], sizes = [16, 128], strides = [1, 1]} : vector<16x130xbf16> to vector<16x128xbf16>
    %23 = tpu.concatenate %20, %21, %22 in 0 : vector<16x128xbf16>, vector<16x128xbf16>, vector<16x128xbf16> -> vector<48x128xbf16>
    %cst_11 = arith.constant dense<0.000000e+00> : vector<16x128xf32>
    %24 = tpu.matmul %16, %23, %cst_11 {dimension_numbers = #tpu.dot_dimension_numbers<[1], [0], [0], [1], [0, 0, 1, 1], [], []>} : vector<16x48xbf16>, vector<48x128xbf16>, vector<16x128xf32> -> vector<16x128xf32>
    %c0_12 = arith.constant 0 : index
    %c0_13 = arith.constant 0 : index
    %25 = vector.load %arg5[%c0_12, %c0_13] : memref<16x1xf32, #tpu.memory_space<vmem>>, vector<16x1xf32>
    %26 = vector.broadcast %25 : vector<16x1xf32> to vector<16x128xf32>
    %27 = arith.addf %24, %26 : vector<16x128xf32>
    %cst_14 = arith.constant 0.000000e+00 : f32
    %28 = vector.broadcast %cst_14 : f32 to vector<16x128xf32>
    %29 = arith.maximumf %27, %28 : vector<16x128xf32>
    %c0_15 = arith.constant 0 : index
    %c0_16 = arith.constant 0 : index
    %30 = vector.load %arg6[%c0_15, %c0_16] : memref<16x4xbf16, #tpu.memory_space<vmem>>, vector<16x4xbf16>
    %cst_17 = arith.constant dense<0.000000e+00> : vector<16x128xf32>
    %31 = tpu.matmul %30, %2, %cst_17 {dimension_numbers = #tpu.dot_dimension_numbers<[1], [0], [0], [1], [0, 0, 1, 1], [], []>} : vector<16x4xbf16>, vector<4x128xbf16>, vector<16x128xf32> -> vector<16x128xf32>
    %c0_18 = arith.constant 0 : index
    %c0_19 = arith.constant 0 : index
    %32 = vector.load %arg7[%c0_18, %c0_19] : memref<16x1xf32, #tpu.memory_space<vmem>>, vector<16x1xf32>
    %33 = vector.broadcast %32 : vector<16x1xf32> to vector<16x128xf32>
    %34 = arith.addf %31, %33 : vector<16x128xf32>
    %35 = arith.addf %29, %34 : vector<16x128xf32>
    %cst_20 = arith.constant 0.000000e+00 : f32
    %36 = vector.broadcast %cst_20 : f32 to vector<16x128xf32>
    %37 = arith.maximumf %35, %36 : vector<16x128xf32>
    %c0_21 = arith.constant 0 : index
    %c0_22 = arith.constant 0 : index
    %c0_23 = arith.constant 0 : index
    %38 = vector.load %arg8[%c0_21, %c0_22, %c0_23] : memref<1x16x128xf32, #tpu.memory_space<vmem>>, vector<1x16x128xf32>
    %39 = vector.shape_cast %38 : vector<1x16x128xf32> to vector<16x128xf32>
    %40 = vector.shape_cast %37 : vector<16x128xf32> to vector<1x16x128xf32>
    tpu.vector_store %arg8[%c0_21, %c0_22, %c0_23], %40 {strides = array<i32>} : memref<1x16x128xf32, #tpu.memory_space<vmem>>, vector<1x16x128xf32>,
    return
  }
  func.func @transform_0(%arg0: i32) -> (i32, i32, i32) {
    %c0_i32 = arith.constant 0 : i32
    %c0_i32_0 = arith.constant 0 : i32
    %c0_i32_1 = arith.constant 0 : i32
    return %arg0, %c0_i32, %c0_i32_0 : i32, i32, i32
  }
  func.func @transform_1(%arg0: i32) -> (i32, i32) {
    %c0_i32 = arith.constant 0 : i32
    %c0_i32_0 = arith.constant 0 : i32
    %c0_i32_1 = arith.constant 0 : i32
    return %c0_i32, %c0_i32_0 : i32, i32
  }
  func.func @transform_2(%arg0: i32) -> (i32, i32) {
    %c0_i32 = arith.constant 0 : i32
    %c0_i32_0 = arith.constant 0 : i32
    %c0_i32_1 = arith.constant 0 : i32
    return %c0_i32, %c0_i32_0 : i32, i32
  }
  func.func @transform_3(%arg0: i32) -> (i32, i32) {
    %c0_i32 = arith.constant 0 : i32
    %c0_i32_0 = arith.constant 0 : i32
    %c0_i32_1 = arith.constant 0 : i32
    return %c0_i32, %c0_i32_0 : i32, i32
  }
  func.func @transform_4(%arg0: i32) -> (i32, i32) {
    %c0_i32 = arith.constant 0 : i32
    %c0_i32_0 = arith.constant 0 : i32
    %c0_i32_1 = arith.constant 0 : i32
    return %c0_i32, %c0_i32_0 : i32, i32
  }
  func.func @transform_5(%arg0: i32) -> (i32, i32) {
    %c0_i32 = arith.constant 0 : i32
    %c0_i32_0 = arith.constant 0 : i32
    %c0_i32_1 = arith.constant 0 : i32
    return %c0_i32, %c0_i32_0 : i32, i32
  }
  func.func @transform_6(%arg0: i32) -> (i32, i32) {
    %c0_i32 = arith.constant 0 : i32
    %c0_i32_0 = arith.constant 0 : i32
    %c0_i32_1 = arith.constant 0 : i32
    return %c0_i32, %c0_i32_0 : i32, i32
  }
  func.func @transform_7(%arg0: i32) -> (i32, i32, i32) {
    %c0_i32 = arith.constant 0 : i32
    %c0_i32_0 = arith.constant 0 : i32
    %c0_i32_1 = arith.constant 0 : i32
    return %arg0, %c0_i32, %c0_i32_0 : i32, i32, i32
  }
}

module attributes {stable_mosaic.version = 11 : i64} {
  func.func @_fused_block_kernel(%arg0: i32, %arg1: memref<1x16x128xf32, #tpu.memory_space<vmem>>, %arg2: memref<16x48xbf16, #tpu.memory_space<vmem>>, %arg3: memref<16x1xf32, #tpu.memory_space<vmem>>, %arg4: memref<16x48xbf16, #tpu.memory_space<vmem>>, %arg5: memref<16x1xf32, #tpu.memory_space<vmem>>, %arg6: memref<1x16x128xf32, #tpu.memory_space<vmem>>) attributes {dimension_semantics = [#tpu.dimension_semantics<parallel>], iteration_bounds = array<i64: 2>, scalar_prefetch = 0 : i64, scratch_operands = 0 : i64, tpu.core_type = #tpu.core_type<tc>, window_params = [{transform_indices = @transform_0, window_bounds = array<i64: 1, 16, 128>}, {pipeline_mode = #tpu.pipeline_mode<synchronous>, transform_indices = @transform_1, window_bounds = array<i64: 16, 48>}, {pipeline_mode = #tpu.pipeline_mode<synchronous>, transform_indices = @transform_2, window_bounds = array<i64: 16, 1>}, {pipeline_mode = #tpu.pipeline_mode<synchronous>, transform_indices = @transform_3, window_bounds = array<i64: 16, 48>}, {pipeline_mode = #tpu.pipeline_mode<synchronous>, transform_indices = @transform_4, window_bounds = array<i64: 16, 1>}, {transform_indices = @transform_5, window_bounds = array<i64: 1, 16, 128>}]} {
    %c0 = arith.constant 0 : index
    %c0_0 = arith.constant 0 : index
    %c0_1 = arith.constant 0 : index
    %0 = vector.load %arg1[%c0, %c0_0, %c0_1] : memref<1x16x128xf32, #tpu.memory_space<vmem>>, vector<1x16x128xf32>
    %1 = vector.shape_cast %0 : vector<1x16x128xf32> to vector<16x128xf32>
    %2 = arith.truncf %1 : vector<16x128xf32> to vector<16x128xbf16>
    %c0_2 = arith.constant 0 : index
    %c0_3 = arith.constant 0 : index
    %3 = vector.load %arg2[%c0_2, %c0_3] : memref<16x48xbf16, #tpu.memory_space<vmem>>, vector<16x48xbf16>
    %cst = arith.constant 0.000000e+00 : bf16
    %4 = vector.broadcast %cst : bf16 to vector<16x4xbf16>
    %5 = tpu.concatenate %4, %2 in 1 : vector<16x4xbf16>, vector<16x128xbf16> -> vector<16x132xbf16>
    %6 = vector.extract_strided_slice %5 {offsets = [0, 0], sizes = [16, 128], strides = [1, 1]} : vector<16x132xbf16> to vector<16x128xbf16>
    %7 = vector.extract_strided_slice %5 {offsets = [0, 2], sizes = [16, 128], strides = [1, 1]} : vector<16x132xbf16> to vector<16x128xbf16>
    %8 = vector.extract_strided_slice %5 {offsets = [0, 4], sizes = [16, 128], strides = [1, 1]} : vector<16x132xbf16> to vector<16x128xbf16>
    %9 = tpu.concatenate %6, %7, %8 in 0 : vector<16x128xbf16>, vector<16x128xbf16>, vector<16x128xbf16> -> vector<48x128xbf16>
    %cst_4 = arith.constant dense<0.000000e+00> : vector<16x128xf32>
    %10 = tpu.matmul %3, %9, %cst_4 {dimension_numbers = #tpu.dot_dimension_numbers<[1], [0], [0], [1], [0, 0, 1, 1], [], []>} : vector<16x48xbf16>, vector<48x128xbf16>, vector<16x128xf32> -> vector<16x128xf32>
    %c0_5 = arith.constant 0 : index
    %c0_6 = arith.constant 0 : index
    %11 = vector.load %arg3[%c0_5, %c0_6] : memref<16x1xf32, #tpu.memory_space<vmem>>, vector<16x1xf32>
    %12 = vector.broadcast %11 : vector<16x1xf32> to vector<16x128xf32>
    %13 = arith.addf %10, %12 : vector<16x128xf32>
    %cst_7 = arith.constant 0.000000e+00 : f32
    %14 = vector.broadcast %cst_7 : f32 to vector<16x128xf32>
    %15 = arith.maximumf %13, %14 : vector<16x128xf32>
    %c0_8 = arith.constant 0 : index
    %c0_9 = arith.constant 0 : index
    %16 = vector.load %arg4[%c0_8, %c0_9] : memref<16x48xbf16, #tpu.memory_space<vmem>>, vector<16x48xbf16>
    %17 = arith.truncf %15 : vector<16x128xf32> to vector<16x128xbf16>
    %cst_10 = arith.constant 0.000000e+00 : bf16
    %18 = vector.broadcast %cst_10 : bf16 to vector<16x4xbf16>
    %19 = tpu.concatenate %18, %17 in 1 : vector<16x4xbf16>, vector<16x128xbf16> -> vector<16x132xbf16>
    %20 = vector.extract_strided_slice %19 {offsets = [0, 0], sizes = [16, 128], strides = [1, 1]} : vector<16x132xbf16> to vector<16x128xbf16>
    %21 = vector.extract_strided_slice %19 {offsets = [0, 2], sizes = [16, 128], strides = [1, 1]} : vector<16x132xbf16> to vector<16x128xbf16>
    %22 = vector.extract_strided_slice %19 {offsets = [0, 4], sizes = [16, 128], strides = [1, 1]} : vector<16x132xbf16> to vector<16x128xbf16>
    %23 = tpu.concatenate %20, %21, %22 in 0 : vector<16x128xbf16>, vector<16x128xbf16>, vector<16x128xbf16> -> vector<48x128xbf16>
    %cst_11 = arith.constant dense<0.000000e+00> : vector<16x128xf32>
    %24 = tpu.matmul %16, %23, %cst_11 {dimension_numbers = #tpu.dot_dimension_numbers<[1], [0], [0], [1], [0, 0, 1, 1], [], []>} : vector<16x48xbf16>, vector<48x128xbf16>, vector<16x128xf32> -> vector<16x128xf32>
    %c0_12 = arith.constant 0 : index
    %c0_13 = arith.constant 0 : index
    %25 = vector.load %arg5[%c0_12, %c0_13] : memref<16x1xf32, #tpu.memory_space<vmem>>, vector<16x1xf32>
    %26 = vector.broadcast %25 : vector<16x1xf32> to vector<16x128xf32>
    %27 = arith.addf %24, %26 : vector<16x128xf32>
    %cst_14 = arith.constant 0.000000e+00 : f32
    %28 = vector.broadcast %cst_14 : f32 to vector<16x128xf32>
    %29 = arith.maximumf %27, %28 : vector<16x128xf32>
    %30 = arith.addf %29, %1 : vector<16x128xf32>
    %cst_15 = arith.constant 0.000000e+00 : f32
    %31 = vector.broadcast %cst_15 : f32 to vector<16x128xf32>
    %32 = arith.maximumf %30, %31 : vector<16x128xf32>
    %c0_16 = arith.constant 0 : index
    %c0_17 = arith.constant 0 : index
    %c0_18 = arith.constant 0 : index
    %33 = vector.load %arg6[%c0_16, %c0_17, %c0_18] : memref<1x16x128xf32, #tpu.memory_space<vmem>>, vector<1x16x128xf32>
    %34 = vector.shape_cast %33 : vector<1x16x128xf32> to vector<16x128xf32>
    %35 = vector.shape_cast %32 : vector<16x128xf32> to vector<1x16x128xf32>
    tpu.vector_store %arg6[%c0_16, %c0_17, %c0_18], %35 {strides = array<i32>} : memref<1x16x128xf32, #tpu.memory_space<vmem>>, vector<1x16x128xf32>,
    return
  }
  func.func @transform_0(%arg0: i32) -> (i32, i32, i32) {
    %c0_i32 = arith.constant 0 : i32
    %c0_i32_0 = arith.constant 0 : i32
    %c0_i32_1 = arith.constant 0 : i32
    return %arg0, %c0_i32, %c0_i32_0 : i32, i32, i32
  }
  func.func @transform_1(%arg0: i32) -> (i32, i32) {
    %c0_i32 = arith.constant 0 : i32
    %c0_i32_0 = arith.constant 0 : i32
    %c0_i32_1 = arith.constant 0 : i32
    return %c0_i32, %c0_i32_0 : i32, i32
  }
  func.func @transform_2(%arg0: i32) -> (i32, i32) {
    %c0_i32 = arith.constant 0 : i32
    %c0_i32_0 = arith.constant 0 : i32
    %c0_i32_1 = arith.constant 0 : i32
    return %c0_i32, %c0_i32_0 : i32, i32
  }
  func.func @transform_3(%arg0: i32) -> (i32, i32) {
    %c0_i32 = arith.constant 0 : i32
    %c0_i32_0 = arith.constant 0 : i32
    %c0_i32_1 = arith.constant 0 : i32
    return %c0_i32, %c0_i32_0 : i32, i32
  }
  func.func @transform_4(%arg0: i32) -> (i32, i32) {
    %c0_i32 = arith.constant 0 : i32
    %c0_i32_0 = arith.constant 0 : i32
    %c0_i32_1 = arith.constant 0 : i32
    return %c0_i32, %c0_i32_0 : i32, i32
  }
  func.func @transform_5(%arg0: i32) -> (i32, i32, i32) {
    %c0_i32 = arith.constant 0 : i32
    %c0_i32_0 = arith.constant 0 : i32
    %c0_i32_1 = arith.constant 0 : i32
    return %arg0, %c0_i32, %c0_i32_0 : i32, i32, i32
  }
}

module attributes {stable_mosaic.version = 11 : i64} {
  func.func @_fused_block_kernel(%arg0: i32, %arg1: memref<1x16x128xf32, #tpu.memory_space<vmem>>, %arg2: memref<8x48xbf16, #tpu.memory_space<vmem>>, %arg3: memref<8x1xf32, #tpu.memory_space<vmem>>, %arg4: memref<8x24xbf16, #tpu.memory_space<vmem>>, %arg5: memref<8x1xf32, #tpu.memory_space<vmem>>, %arg6: memref<8x16xbf16, #tpu.memory_space<vmem>>, %arg7: memref<8x1xf32, #tpu.memory_space<vmem>>, %arg8: memref<1x8x128xf32, #tpu.memory_space<vmem>>) attributes {dimension_semantics = [#tpu.dimension_semantics<parallel>], iteration_bounds = array<i64: 2>, scalar_prefetch = 0 : i64, scratch_operands = 0 : i64, tpu.core_type = #tpu.core_type<tc>, window_params = [{transform_indices = @transform_0, window_bounds = array<i64: 1, 16, 128>}, {pipeline_mode = #tpu.pipeline_mode<synchronous>, transform_indices = @transform_1, window_bounds = array<i64: 8, 48>}, {pipeline_mode = #tpu.pipeline_mode<synchronous>, transform_indices = @transform_2, window_bounds = array<i64: 8, 1>}, {pipeline_mode = #tpu.pipeline_mode<synchronous>, transform_indices = @transform_3, window_bounds = array<i64: 8, 24>}, {pipeline_mode = #tpu.pipeline_mode<synchronous>, transform_indices = @transform_4, window_bounds = array<i64: 8, 1>}, {pipeline_mode = #tpu.pipeline_mode<synchronous>, transform_indices = @transform_5, window_bounds = array<i64: 8, 16>}, {pipeline_mode = #tpu.pipeline_mode<synchronous>, transform_indices = @transform_6, window_bounds = array<i64: 8, 1>}, {transform_indices = @transform_7, window_bounds = array<i64: 1, 8, 128>}]} {
    %c0 = arith.constant 0 : index
    %c0_0 = arith.constant 0 : index
    %c0_1 = arith.constant 0 : index
    %0 = vector.load %arg1[%c0, %c0_0, %c0_1] : memref<1x16x128xf32, #tpu.memory_space<vmem>>, vector<1x16x128xf32>
    %1 = vector.shape_cast %0 : vector<1x16x128xf32> to vector<16x128xf32>
    %2 = arith.truncf %1 : vector<16x128xf32> to vector<16x128xbf16>
    %c0_2 = arith.constant 0 : index
    %c0_3 = arith.constant 0 : index
    %3 = vector.load %arg2[%c0_2, %c0_3] : memref<8x48xbf16, #tpu.memory_space<vmem>>, vector<8x48xbf16>
    %cst = arith.constant 0.000000e+00 : bf16
    %4 = vector.broadcast %cst : bf16 to vector<16x8xbf16>
    %5 = tpu.concatenate %4, %2 in 1 : vector<16x8xbf16>, vector<16x128xbf16> -> vector<16x136xbf16>
    %6 = vector.extract_strided_slice %5 {offsets = [0, 0], sizes = [16, 128], strides = [1, 1]} : vector<16x136xbf16> to vector<16x128xbf16>
    %7 = vector.extract_strided_slice %5 {offsets = [0, 4], sizes = [16, 128], strides = [1, 1]} : vector<16x136xbf16> to vector<16x128xbf16>
    %8 = vector.extract_strided_slice %5 {offsets = [0, 8], sizes = [16, 128], strides = [1, 1]} : vector<16x136xbf16> to vector<16x128xbf16>
    %9 = tpu.concatenate %6, %7, %8 in 0 : vector<16x128xbf16>, vector<16x128xbf16>, vector<16x128xbf16> -> vector<48x128xbf16>
    %cst_4 = arith.constant dense<0.000000e+00> : vector<8x128xf32>
    %10 = tpu.matmul %3, %9, %cst_4 {dimension_numbers = #tpu.dot_dimension_numbers<[1], [0], [0], [1], [0, 0, 1, 1], [], []>} : vector<8x48xbf16>, vector<48x128xbf16>, vector<8x128xf32> -> vector<8x128xf32>
    %c0_5 = arith.constant 0 : index
    %c0_6 = arith.constant 0 : index
    %11 = vector.load %arg3[%c0_5, %c0_6] : memref<8x1xf32, #tpu.memory_space<vmem>>, vector<8x1xf32>
    %12 = vector.broadcast %11 : vector<8x1xf32> to vector<8x128xf32>
    %13 = arith.addf %10, %12 : vector<8x128xf32>
    %cst_7 = arith.constant 0.000000e+00 : f32
    %14 = vector.broadcast %cst_7 : f32 to vector<8x128xf32>
    %15 = arith.maximumf %13, %14 : vector<8x128xf32>
    %c0_8 = arith.constant 0 : index
    %c0_9 = arith.constant 0 : index
    %16 = vector.load %arg4[%c0_8, %c0_9] : memref<8x24xbf16, #tpu.memory_space<vmem>>, vector<8x24xbf16>
    %17 = arith.truncf %15 : vector<8x128xf32> to vector<8x128xbf16>
    %cst_10 = arith.constant 0.000000e+00 : bf16
    %18 = vector.broadcast %cst_10 : bf16 to vector<8x8xbf16>
    %19 = tpu.concatenate %18, %17 in 1 : vector<8x8xbf16>, vector<8x128xbf16> -> vector<8x136xbf16>
    %20 = vector.extract_strided_slice %19 {offsets = [0, 0], sizes = [8, 128], strides = [1, 1]} : vector<8x136xbf16> to vector<8x128xbf16>
    %21 = vector.extract_strided_slice %19 {offsets = [0, 4], sizes = [8, 128], strides = [1, 1]} : vector<8x136xbf16> to vector<8x128xbf16>
    %22 = vector.extract_strided_slice %19 {offsets = [0, 8], sizes = [8, 128], strides = [1, 1]} : vector<8x136xbf16> to vector<8x128xbf16>
    %23 = tpu.concatenate %20, %21, %22 in 0 : vector<8x128xbf16>, vector<8x128xbf16>, vector<8x128xbf16> -> vector<24x128xbf16>
    %cst_11 = arith.constant dense<0.000000e+00> : vector<8x128xf32>
    %24 = tpu.matmul %16, %23, %cst_11 {dimension_numbers = #tpu.dot_dimension_numbers<[1], [0], [0], [1], [0, 0, 1, 1], [], []>} : vector<8x24xbf16>, vector<24x128xbf16>, vector<8x128xf32> -> vector<8x128xf32>
    %c0_12 = arith.constant 0 : index
    %c0_13 = arith.constant 0 : index
    %25 = vector.load %arg5[%c0_12, %c0_13] : memref<8x1xf32, #tpu.memory_space<vmem>>, vector<8x1xf32>
    %26 = vector.broadcast %25 : vector<8x1xf32> to vector<8x128xf32>
    %27 = arith.addf %24, %26 : vector<8x128xf32>
    %cst_14 = arith.constant 0.000000e+00 : f32
    %28 = vector.broadcast %cst_14 : f32 to vector<8x128xf32>
    %29 = arith.maximumf %27, %28 : vector<8x128xf32>
    %c0_15 = arith.constant 0 : index
    %c0_16 = arith.constant 0 : index
    %30 = vector.load %arg6[%c0_15, %c0_16] : memref<8x16xbf16, #tpu.memory_space<vmem>>, vector<8x16xbf16>
    %cst_17 = arith.constant dense<0.000000e+00> : vector<8x128xf32>
    %31 = tpu.matmul %30, %2, %cst_17 {dimension_numbers = #tpu.dot_dimension_numbers<[1], [0], [0], [1], [0, 0, 1, 1], [], []>} : vector<8x16xbf16>, vector<16x128xbf16>, vector<8x128xf32> -> vector<8x128xf32>
    %c0_18 = arith.constant 0 : index
    %c0_19 = arith.constant 0 : index
    %32 = vector.load %arg7[%c0_18, %c0_19] : memref<8x1xf32, #tpu.memory_space<vmem>>, vector<8x1xf32>
    %33 = vector.broadcast %32 : vector<8x1xf32> to vector<8x128xf32>
    %34 = arith.addf %31, %33 : vector<8x128xf32>
    %35 = arith.addf %29, %34 : vector<8x128xf32>
    %cst_20 = arith.constant 0.000000e+00 : f32
    %36 = vector.broadcast %cst_20 : f32 to vector<8x128xf32>
    %37 = arith.maximumf %35, %36 : vector<8x128xf32>
    %c0_21 = arith.constant 0 : index
    %c0_22 = arith.constant 0 : index
    %c0_23 = arith.constant 0 : index
    %38 = vector.load %arg8[%c0_21, %c0_22, %c0_23] : memref<1x8x128xf32, #tpu.memory_space<vmem>>, vector<1x8x128xf32>
    %39 = vector.shape_cast %38 : vector<1x8x128xf32> to vector<8x128xf32>
    %40 = vector.shape_cast %37 : vector<8x128xf32> to vector<1x8x128xf32>
    tpu.vector_store %arg8[%c0_21, %c0_22, %c0_23], %40 {strides = array<i32>} : memref<1x8x128xf32, #tpu.memory_space<vmem>>, vector<1x8x128xf32>,
    return
  }
  func.func @transform_0(%arg0: i32) -> (i32, i32, i32) {
    %c0_i32 = arith.constant 0 : i32
    %c0_i32_0 = arith.constant 0 : i32
    %c0_i32_1 = arith.constant 0 : i32
    return %arg0, %c0_i32, %c0_i32_0 : i32, i32, i32
  }
  func.func @transform_1(%arg0: i32) -> (i32, i32) {
    %c0_i32 = arith.constant 0 : i32
    %c0_i32_0 = arith.constant 0 : i32
    %c0_i32_1 = arith.constant 0 : i32
    return %c0_i32, %c0_i32_0 : i32, i32
  }
  func.func @transform_2(%arg0: i32) -> (i32, i32) {
    %c0_i32 = arith.constant 0 : i32
    %c0_i32_0 = arith.constant 0 : i32
    %c0_i32_1 = arith.constant 0 : i32
    return %c0_i32, %c0_i32_0 : i32, i32
  }
  func.func @transform_3(%arg0: i32) -> (i32, i32) {
    %c0_i32 = arith.constant 0 : i32
    %c0_i32_0 = arith.constant 0 : i32
    %c0_i32_1 = arith.constant 0 : i32
    return %c0_i32, %c0_i32_0 : i32, i32
  }
  func.func @transform_4(%arg0: i32) -> (i32, i32) {
    %c0_i32 = arith.constant 0 : i32
    %c0_i32_0 = arith.constant 0 : i32
    %c0_i32_1 = arith.constant 0 : i32
    return %c0_i32, %c0_i32_0 : i32, i32
  }
  func.func @transform_5(%arg0: i32) -> (i32, i32) {
    %c0_i32 = arith.constant 0 : i32
    %c0_i32_0 = arith.constant 0 : i32
    %c0_i32_1 = arith.constant 0 : i32
    return %c0_i32, %c0_i32_0 : i32, i32
  }
  func.func @transform_6(%arg0: i32) -> (i32, i32) {
    %c0_i32 = arith.constant 0 : i32
    %c0_i32_0 = arith.constant 0 : i32
    %c0_i32_1 = arith.constant 0 : i32
    return %c0_i32, %c0_i32_0 : i32, i32
  }
  func.func @transform_7(%arg0: i32) -> (i32, i32, i32) {
    %c0_i32 = arith.constant 0 : i32
    %c0_i32_0 = arith.constant 0 : i32
    %c0_i32_1 = arith.constant 0 : i32
    return %arg0, %c0_i32, %c0_i32_0 : i32, i32, i32
  }
}

</mosaic_0001>

<llo_original>
// kernel: temporal_conv_net.3
$region0: #{temporal_conv_net.3}
  #allocation0 [shape = 'u32[]', space=smem, size = 0x4, offset = 0x4, fixed_abs, tag = 'smem constant byte address 0x4 - core index']
  #allocation1 [shape = 'u32[144,128]{1,0:T(1,128)}', space=vmem, size = 0x12000, scoped, tag = 'internal scratch']
  %s0 = inlined_call_operand.vmem [shape: f32[2,4,128], index: 0, kind: input, shape index: {}]
  %s1 = inlined_call_operand.vmem [shape: bf16[16,12], index: 1, kind: input, shape index: {}]
  %s2 = inlined_call_operand.vmem [shape: f32[16,1], index: 2, kind: input, shape index: {}]
  %s3 = inlined_call_operand.vmem [shape: bf16[16,48], index: 3, kind: input, shape index: {}]
  %s4 = inlined_call_operand.vmem [shape: f32[16,1], index: 4, kind: input, shape index: {}]
  %s5 = inlined_call_operand.vmem [shape: bf16[16,4], index: 5, kind: input, shape index: {}]
  %s6 = inlined_call_operand.vmem [shape: f32[16,1], index: 6, kind: input, shape index: {}]
  %s7 = inlined_call_operand.vmem [shape: f32[2,16,128], index: 7, kind: output, shape index: {}]
  %s8 = sld [smem:[#allocation0]]
  $region61: #{temporal_conv_net.3} parent=0
    _
  %s10 = ssub.s32 1, %s8
  %s11 = scalar_select 0, %s10, %s8
  loop: start=0, step=1, limit=4
  $region2: #{temporal_conv_net.3} parent=0 // loop_pre_header
    _
  $region3: #{temporal_conv_net.3} parent=0 // loop_header
    %s13 = sphi 0, %s17
    %p14 = scmp.ge.s32.totalorder %s13, 4
    %s23 = sphi 0, %s25
    %s26 = sphi 0, %s23
    %s27 = sphi 0, %s26
    %s43 = sphi 0, %s27
    %s47 = sphi 0, %s47
    %s49 = sphi 0, %s47
    %s50 = sphi 0, %s49
    %s64 = sphi 0, %s50
    %s68 = sphi 0, %s68
    %s70 = sphi 0, %s68
    %s71 = sphi 0, %s70
    %s85 = sphi 0, %s71
    %s89 = sphi 0, %s89
    %s91 = sphi 0, %s89
    %s92 = sphi 0, %s91
    %s106 = sphi 0, %s92
    %s110 = sphi 0, %s110
    %s112 = sphi 0, %s110
    %s113 = sphi 0, %s112
    %s127 = sphi 0, %s113
    %s131 = sphi 0, %s131
    %s133 = sphi 0, %s131
    %s134 = sphi 0, %s133
    %s148 = sphi 0, %s134
    %s152 = sphi 0, %s152
    %s154 = sphi 0, %s152
    %s155 = sphi 0, %s154
    %s169 = sphi 0, %s155
    %s175 = sphi 0, %s177
    %s178 = sphi 0, %s175
    %s179 = sphi 0, %s178
    %s195 = sphi 0, %s179
  $region4: #{temporal_conv_net.3} parent=0 // loop_header_branch
    %16 = sbr.rel (%p14) target = $region8
  $region5: #{temporal_conv_net.3} parent=0 // loop_body
    %s18 = ssub.s32 %s13, 1
    %s19 = ssub.s32 %s13, 2
    %s20 = sadd.s32 %s13, 1
    %s21 = ssub.s32 %s13, %s20
    %p22 = scmp.eq.s32.totalorder %s21, 0
    %s24 = sadd.s32 %s23, 1
    %s25 = scalar_select %p22, %s23, %s24
    %p28 = pneg %p22
    %p29 = scmp.eq.s32.totalorder %s13, 1
    %p30 = por %p28, %p29
    %p31 = scmp.ne.s32.totalorder %s23, %s26
    %p32 = scmp.eq.s32.totalorder %s13, 0
    %p33 = por %p31, %p32
    %p34 = scmp.ne.s32.totalorder %s23, %s26
    %p35 = scmp.eq.s32.totalorder %s18, 1
    %p36 = por %p34, %p35
    %p37 = scmp.ne.s32.totalorder %s26, %s27
    %p38 = scmp.eq.s32.totalorder %s18, 0
    %p39 = por %p37, %p38
    %p40 = scmp.ne.s32.totalorder %s26, %s27
    %p41 = scmp.eq.s32.totalorder %s19, 1
    %p42 = por %p40, %p41
    %p44 = scmp.ne.s32.totalorder %s27, %s43
    %p45 = scmp.eq.s32.totalorder %s19, 0
    %p46 = por %p44, %p45
    %s48 = sadd.s32 %s47, 1
    %p51 = scmp.eq.s32.totalorder %s13, 1
    %p52 = scmp.ne.s32.totalorder %s47, %s49
    %p53 = scmp.eq.s32.totalorder %s13, 0
    %p54 = por %p52, %p53
    %p55 = scmp.ne.s32.totalorder %s47, %s49
    %p56 = scmp.eq.s32.totalorder %s18, 1
    %p57 = por %p55, %p56
    %p58 = scmp.ne.s32.totalorder %s49, %s50
    %p59 = scmp.eq.s32.totalorder %s18, 0
    %p60 = por %p58, %p59
    %p61 = scmp.ne.s32.totalorder %s49, %s50
    %p62 = scmp.eq.s32.totalorder %s19, 1
    %p63 = por %p61, %p62
    %p65 = scmp.ne.s32.totalorder %s50, %s64
    %p66 = scmp.eq.s32.totalorder %s19, 0
    %p67 = por %p65, %p66
    %s69 = sadd.s32 %s68, 1
    %p72 = scmp.eq.s32.totalorder %s13, 1
    %p73 = scmp.ne.s32.totalorder %s68, %s70
    %p74 = scmp.eq.s32.totalorder %s13, 0
    %p75 = por %p73, %p74
    %p76 = scmp.ne.s32.totalorder %s68, %s70
    %p77 = scmp.eq.s32.totalorder %s18, 1
    %p78 = por %p76, %p77
    %p79 = scmp.ne.s32.totalorder %s70, %s71
    %p80 = scmp.eq.s32.totalorder %s18, 0
    %p81 = por %p79, %p80
    %p82 = scmp.ne.s32.totalorder %s70, %s71
    %p83 = scmp.eq.s32.totalorder %s19, 1
    %p84 = por %p82, %p83
    %p86 = scmp.ne.s32.totalorder %s71, %s85
    %p87 = scmp.eq.s32.totalorder %s19, 0
    %p88 = por %p86, %p87
    %s90 = sadd.s32 %s89, 1
    %p93 = scmp.eq.s32.totalorder %s13, 1
    %p94 = scmp.ne.s32.totalorder %s89, %s91
    %p95 = scmp.eq.s32.totalorder %s13, 0
    %p96 = por %p94, %p95
    %p97 = scmp.ne.s32.totalorder %s89, %s91
    %p98 = scmp.eq.s32.totalorder %s18, 1
    %p99 = por %p97, %p98
    %p100 = scmp.ne.s32.totalorder %s91, %s92
    %p101 = scmp.eq.s32.totalorder %s18, 0
    %p102 = por %p100, %p101
    %p103 = scmp.ne.s32.totalorder %s91, %s92
    %p104 = scmp.eq.s32.totalorder %s19, 1
    %p105 = por %p103, %p104
    %p107 = scmp.ne.s32.totalorder %s92, %s106
    %p108 = scmp.eq.s32.totalorder %s19, 0
    %p109 = por %p107, %p108
    %s111 = sadd.s32 %s110, 1
    %p114 = scmp.eq.s32.totalorder %s13, 1
    %p115 = scmp.ne.s32.totalorder %s110, %s112
    %p116 = scmp.eq.s32.totalorder %s13, 0
    %p117 = por %p115, %p116
    %p118 = scmp.ne.s32.totalorder %s110, %s112
    %p119 = scmp.eq.s32.totalorder %s18, 1
    %p120 = por %p118, %p119
    %p121 = scmp.ne.s32.totalorder %s112, %s113
    %p122 = scmp.eq.s32.totalorder %s18, 0
    %p123 = por %p121, %p122
    %p124 = scmp.ne.s32.totalorder %s112, %s113
    %p125 = scmp.eq.s32.totalorder %s19, 1
    %p126 = por %p124, %p125
    %p128 = scmp.ne.s32.totalorder %s113, %s127
    %p129 = scmp.eq.s32.totalorder %s19, 0
    %p130 = por %p128, %p129
    %s132 = sadd.s32 %s131, 1
    %p135 = scmp.eq.s32.totalorder %s13, 1
    %p136 = scmp.ne.s32.totalorder %s131, %s133
    %p137 = scmp.eq.s32.totalorder %s13, 0
    %p138 = por %p136, %p137
    %p139 = scmp.ne.s32.totalorder %s131, %s133
    %p140 = scmp.eq.s32.totalorder %s18, 1
    %p141 = por %p139, %p140
    %p142 = scmp.ne.s32.totalorder %s133, %s134
    %p143 = scmp.eq.s32.totalorder %s18, 0
    %p144 = por %p142, %p143
    %p145 = scmp.ne.s32.totalorder %s133, %s134
    %p146 = scmp.eq.s32.totalorder %s19, 1
    %p147 = por %p145, %p146
    %p149 = scmp.ne.s32.totalorder %s134, %s148
    %p150 = scmp.eq.s32.totalorder %s19, 0
    %p151 = por %p149, %p150
    %s153 = sadd.s32 %s152, 1
    %p156 = scmp.eq.s32.totalorder %s13, 1
    %p157 = scmp.ne.s32.totalorder %s152, %s154
    %p158 = scmp.eq.s32.totalorder %s13, 0
    %p159 = por %p157, %p158
    %p160 = scmp.ne.s32.totalorder %s152, %s154
    %p161 = scmp.eq.s32.totalorder %s18, 1
    %p162 = por %p160, %p161
    %p163 = scmp.ne.s32.totalorder %s154, %s155
    %p164 = scmp.eq.s32.totalorder %s18, 0
    %p165 = por %p163, %p164
    %p166 = scmp.ne.s32.totalorder %s154, %s155
    %p167 = scmp.eq.s32.totalorder %s19, 1
    %p168 = por %p166, %p167
    %p170 = scmp.ne.s32.totalorder %s155, %s169
    %p171 = scmp.eq.s32.totalorder %s19, 0
    %p172 = por %p170, %p171
    %s173 = ssub.s32 %s13, %s20
    %p174 = scmp.eq.s32.totalorder %s173, 0
    %s176 = sadd.s32 %s175, 1
    %s177 = scalar_select %p174, %s175, %s176
    %p180 = pneg %p174
    %p181 = scmp.eq.s32.totalorder %s13, 1
    %p182 = por %p180, %p181
    %p183 = scmp.ne.s32.totalorder %s175, %s178
    %p184 = scmp.eq.s32.totalorder %s13, 0
    %p185 = por %p183, %p184
    %p186 = scmp.ne.s32.totalorder %s175, %s178
    %p187 = scmp.eq.s32.totalorder %s18, 1
    %p188 = por %p186, %p187
    %p189 = scmp.ne.s32.totalorder %s178, %s179
    %p190 = scmp.eq.s32.totalorder %s18, 0
    %p191 = por %p189, %p190
    %p192 = scmp.ne.s32.totalorder %s178, %s179
    %p193 = scmp.eq.s32.totalorder %s19, 1
    %p194 = por %p192, %p193
    %p196 = scmp.ne.s32.totalorder %s179, %s195
    %p197 = scmp.eq.s32.totalorder %s19, 0
    %p198 = por %p196, %p197
    %p199 = scmp.le.s32.totalorder 1, %s13
    %p200 = scmp.lt.s32.totalorder %s13, 3
    %p201 = pnand %p199, %p200
    %p202 = pneg %p201
    // Predicated region
    $region9: #{temporal_conv_net.3} parent=5 // pred_check
      _
    $region10: #{temporal_conv_net.3} parent=5 // pred_check_branch
      %204 = sbr.rel (%p201) target = $region12
    $region11: #{temporal_conv_net.3} parent=5 // pred_region
      %s205 = ssub.s32 %s13, 1
      // Predicated region
      $region13: #{temporal_conv_net.3} parent=11 // pred_check
        %p206 = pneg %p60
      $region14: #{temporal_conv_net.3} parent=11 // pred_check_branch
        %208 = sbr.rel (%p206) target = $region16
      $region15: #{temporal_conv_net.3} parent=11 // pred_region
        _
      $region16: #{temporal_conv_net.3} parent=11 // pred_fallthru
        _
      // Predicated region
      $region17: #{temporal_conv_net.3} parent=11 // pred_check
        %p209 = pneg %p81
      $region18: #{temporal_conv_net.3} parent=11 // pred_check_branch
        %211 = sbr.rel (%p209) target = $region20
      $region19: #{temporal_conv_net.3} parent=11 // pred_region
        _
      $region20: #{temporal_conv_net.3} parent=11 // pred_fallthru
        _
      // Predicated region
      $region21: #{temporal_conv_net.3} parent=11 // pred_check
        %p212 = pneg %p102
      $region22: #{temporal_conv_net.3} parent=11 // pred_check_branch
        %214 = sbr.rel (%p212) target = $region24
      $region23: #{temporal_conv_net.3} parent=11 // pred_region
        _
      $region24: #{temporal_conv_net.3} parent=11 // pred_fallthru
        _
      // Predicated region
      $region25: #{temporal_conv_net.3} parent=11 // pred_check
        %p215 = pneg %p123
      $region26: #{temporal_conv_net.3} parent=11 // pred_check_branch
        %217 = sbr.rel (%p215) target = $region28
      $region27: #{temporal_conv_net.3} parent=11 // pred_region
        _
      $region28: #{temporal_conv_net.3} parent=11 // pred_fallthru
        _
      // Predicated region
      $region29: #{temporal_conv_net.3} parent=11 // pred_check
        %p218 = pneg %p144
      $region30: #{temporal_conv_net.3} parent=11 // pred_check_branch
        %220 = sbr.rel (%p218) target = $region32
      $region31: #{temporal_conv_net.3} parent=11 // pred_region
        _
      $region32: #{temporal_conv_net.3} parent=11 // pred_fallthru
        _
      // Predicated region
      $region33: #{temporal_conv_net.3} parent=11 // pred_check
        %p221 = pneg %p165
      $region34: #{temporal_conv_net.3} parent=11 // pred_check_branch
        %223 = sbr.rel (%p221) target = $region36
      $region35: #{temporal_conv_net.3} parent=11 // pred_region
        _
      $region36: #{temporal_conv_net.3} parent=11 // pred_fallthru
        _
    $region12: #{temporal_conv_net.3} parent=5 // pred_fallthru
      _
    %p224 = scmp.lt.s32.totalorder %s13, 2
    // Predicated region
    $region37: #{temporal_conv_net.3} parent=5 // pred_check
      %p225 = pneg %p224
    $region38: #{temporal_conv_net.3} parent=5 // pred_check_branch
      %227 = sbr.rel (%p225) target = $region40
    $region39: #{temporal_conv_net.3} parent=5 // pred_region
      // Predicated region
      $region41: #{temporal_conv_net.3} parent=39 // pred_check
        %p228 = pneg %p33
      $region42: #{temporal_conv_net.3} parent=39 // pred_check_branch
        %230 = sbr.rel (%p228) target = $region44
      $region43: #{temporal_conv_net.3} parent=39 // pred_region
        %p231 = scmp.lt.s32.totalorder %s13, 1
        %s232 = scalar_select %p231, %s13, 1
        %s233 = smul.addr %s232, 4
        %s234 = scalar_lea.vmem %s0, %s233
      $region44: #{temporal_conv_net.3} parent=39 // pred_fallthru
        _
    $region40: #{temporal_conv_net.3} parent=5 // pred_fallthru
      _
    %p235 = scmp.le.s32.totalorder 1, %s13
    %p236 = scmp.lt.s32.totalorder %s13, 3
    %p237 = pnand %p235, %p236
    %p238 = pneg %p237
    // Predicated region
    $region45: #{temporal_conv_net.3} parent=5 // pred_check
      _
    $region46: #{temporal_conv_net.3} parent=5 // pred_check_branch
      %240 = sbr.rel (%p237) target = $region48
    $region47: #{temporal_conv_net.3} parent=5 // pred_region
      %s241 = ssub.s32 %s13, 1
      %p242 = scmp.lt.s32.totalorder %s18, 1
      %s243 = scalar_select %p242, %s18, 1
      %s244 = smul.addr %s243, 4
      %s245 = scalar_lea.vmem %s0, %s244
      %p246 = pneg %p39
      %p247 = pneg %p36
      %p248 = pneg %p60
      %p249 = pneg %p57
      %p250 = pneg %p81
      %p251 = pneg %p78
      %p252 = pneg %p102
      %p253 = pneg %p99
      %p254 = pneg %p123
      %p255 = pneg %p120
      %p256 = pneg %p144
      %p257 = pneg %p141
      %p258 = pneg %p165
      %p259 = pneg %p162
      %p260 = pneg %p191
      %p261 = pneg %p188
      %p262 = scmp.lt.s32.totalorder %s18, 1
      %s263 = scalar_select %p262, %s18, 1
      %s264 = smul.addr %s263, 2
      %s265 = smul.addr %s264, 8
      %s266 = scalar_lea.vmem %s7, %s265
      %p267 = scmp.lt.s32.totalorder %s18, 1
      %s268 = scalar_select %p267, %s18, 1
      %s269 = smul.addr %s268, 4
      %s270 = scalar_lea.vmem %s0, %s269
      %p271 = scmp.lt.s32.totalorder %s18, 1
      %s272 = scalar_select %p271, %s18, 1
      %s273 = smul.addr %s272, 2
      %s274 = smul.addr %s273, 8
      %s275 = scalar_lea.vmem %s7, %s274
      %v277 = vld [vmem:[%s270] sm:$0xf]
      %v278 = vpack.c.bf16 %v277, %v277
      %v279 = vld [vmem:[%s1] sm:$0xf]
      %v280 = vld [vmem:[%s1 + $0x4] sm:$0xf]
      %282 = vrot.lane.b32.xlu0 %v278, 2
      %v283 = vpop.permute.xlu0 %282
      %vm284 = vcmask 15360
      %v287 = vsel %vm284, 0, %v283
      %v289 = vrot.slane %v287, 6
      %v290 = vrot.slane %v283, 6
      %291 = vrot.lane.b32.xlu0 %v289, 127
      %v292 = vpop.permute.xlu0 %291
      %293 = vrot.lane.b32.xlu0 %v290, 127
      %v294 = vpop.permute.xlu0 %293
      %vm295 = vcmask 1039360
      %v296 = vsel %vm295, %v292, %v294
      %v297 = vrot.slane %v287, 4
      %v298 = vrot.slane %v283, 4
      %299 = vrot.lane.b32.xlu0 %v297, 126
      %v300 = vpop.permute.xlu0 %299
      %301 = vrot.lane.b32.xlu0 %v298, 126
      %v302 = vpop.permute.xlu0 %301
      %vm303 = vcmask 1031168
      %v304 = vsel %vm303, %v300, %v302
      %vm305 = vcmask 1041408
      %v307 = vsel %vm305, %v287, %v296
      %vm308 = vcmask 1043456
      %v310 = vsel %vm308, %v307, %v304
      %v311 = vld [vmem:[%s2] sm:$0xff]
      %v312 = vld [vmem:[%s2 + $0x8] sm:$0xff]
      %314 = vset.pattern.permute.xlu0 0
      %315 = vperm.xlu0 %314, %v311
      %v316 = vpop.permute.xlu0 %315
      %319 = vset.pattern.permute.xlu0 0
      %320 = vperm.xlu0 %319, %v312
      %v321 = vpop.permute.xlu0 %320
      %v325 = vunpack.c.l.b16 %v279
      %v326 = vunpack.c.l.b16 %v280
      %v327 = vpack.c.b16 %v326, %v325
      %vm328 = vcmask 97280
      %v330 = vsel %vm328, %v327, 0
      %vm332 = vcmask 1045504
      %v333 = vsel %vm332, %v310, 0
      %335 = vmatprep.subr.bf16.mxu0 0
      %336 = vmatpush1.bf16.msra.mxu0 %v333
      %337 = vmatprep.subr.bf16.mxu0 0
      %338 = vmatpush1.bf16.msra.mxu0 0
      %339 = vmatprep.subr.bf16.mxu0 0
      %340 = vmatpush1.bf16.msra.mxu0 0
      %341 = vmatprep.subr.bf16.mxu0 0
      %342 = vmatpush1.bf16.msra.mxu0 0
      %343 = vmatprep.subr.bf16.mxu0 0
      %344 = vmatpush1.bf16.msra.mxu0 0
      %345 = vmatprep.subr.bf16.mxu0 0
      %346 = vmatpush1.bf16.msra.mxu0 0
      %347 = vmatprep.subr.bf16.mxu0 0
      %348 = vmatpush1.bf16.msra.mxu0 0
      %349 = vmatprep.subr.bf16.mxu0 0
      %350 = vmatpush1.bf16.msra.mxu0 0
      %351 = vmatprep.subr.bf16.mxu0 0
      %352 = vmatpush1.bf16.msra.mxu0 0
      %353 = vmatprep.subr.bf16.mxu0 0
      %354 = vmatpush1.bf16.msra.mxu0 0
      %355 = vmatprep.subr.bf16.mxu0 0
      %356 = vmatpush1.bf16.msra.mxu0 0
      %357 = vmatprep.subr.bf16.mxu0 0
      %358 = vmatpush1.bf16.msra.mxu0 0
      %359 = vmatprep.subr.bf16.mxu0 0
      %360 = vmatpush1.bf16.msra.mxu0 0
      %361 = vmatprep.subr.bf16.mxu0 0
      %362 = vmatpush1.bf16.msra.mxu0 0
      %363 = vmatprep.subr.bf16.mxu0 0
      %364 = vmatpush1.bf16.msra.mxu0 0
      %365 = vmatprep.subr.bf16.mxu0 0
      %366 = vmatpush1.bf16.msra.mxu0 0
      %367 = vmatprep.mubr.bf16.mxu0 0
      %368 = vmatmul.mubr.bf16.gmra.mrb[0].mxu0 %v330
      %v369 = vpop.f32.mrb[0].mxu0
      %v370 = vadd.f32 %v316, %v369
      %v371 = vpop.f32.mrb[0].mxu0
      %v372 = vpop.f32.mrb[0].mxu0
      %v373 = vadd.f32 %v321, %v372
      %v374 = vpop.f32.mrb[0].mxu0
      %375 = vdwg.mxu0
      %v376 = vmax.f32 %v370, 0.0
      %v377 = vmax.f32 %v373, 0.0
      %v378 = vld [vmem:[%s3] sm:$0xf]
      %v379 = vld [vmem:[%s3 + $0x4] sm:$0xf]
      %v380 = vpack.c.bf16 %v377, %v376
      %382 = vrot.lane.b32.xlu0 %v380, 2
      %v383 = vpop.permute.xlu0 %382
      %v385 = vsel %vm284, 0, %v383
      %388 = vrot.lane.b32.xlu0 %v385, 127
      %v389 = vpop.permute.xlu0 %388
      %390 = vrot.lane.b32.xlu0 %v383, 127
      %v391 = vpop.permute.xlu0 %390
      %v392 = vsel %vm295, %v389, %v391
      %394 = vrot.lane.b32.xlu0 %v385, 126
      %v395 = vpop.permute.xlu0 %394
      %396 = vrot.lane.b32.xlu0 %v383, 126
      %v397 = vpop.permute.xlu0 %396
      %v398 = vsel %vm303, %v395, %v397
      %v400 = vld [vmem:[%s4] sm:$0xff]
      %v401 = vld [vmem:[%s4 + $0x8] sm:$0xff]
      %403 = vset.pattern.permute.xlu0 0
      %404 = vperm.xlu0 %403, %v400
      %v405 = vpop.permute.xlu0 %404
      %408 = vset.pattern.permute.xlu0 0
      %409 = vperm.xlu0 %408, %v401
      %v410 = vpop.permute.xlu0 %409
      %v414 = vunpack.c.l.b16 %v378
      %v415 = vunpack.c.l.b16 %v379
      %v416 = vpack.c.b16 %v415, %v414
      %vm417 = vcmask 392192
      %v419 = vsel %vm417, %v416, 0
      %421 = vmatprep.subr.bf16.mxu0 0
      %422 = vmatpush1.bf16.msra.mxu0 %v385
      %423 = vmatprep.subr.bf16.mxu0 0
      %424 = vmatpush1.bf16.msra.mxu0 %v392
      %425 = vmatprep.subr.bf16.mxu0 0
      %426 = vmatpush1.bf16.msra.mxu0 %v398
      %427 = vmatprep.subr.bf16.mxu0 0
      %428 = vmatpush1.bf16.msra.mxu0 0
      %429 = vmatprep.subr.bf16.mxu0 0
      %430 = vmatpush1.bf16.msra.mxu0 0
      %431 = vmatprep.subr.bf16.mxu0 0
      %432 = vmatpush1.bf16.msra.mxu0 0
      %433 = vmatprep.subr.bf16.mxu0 0
      %434 = vmatpush1.bf16.msra.mxu0 0
      %435 = vmatprep.subr.bf16.mxu0 0
      %436 = vmatpush1.bf16.msra.mxu0 0
      %437 = vmatprep.subr.bf16.mxu0 0
      %438 = vmatpush1.bf16.msra.mxu0 0
      %439 = vmatprep.subr.bf16.mxu0 0
      %440 = vmatpush1.bf16.msra.mxu0 0
      %441 = vmatprep.subr.bf16.mxu0 0
      %442 = vmatpush1.bf16.msra.mxu0 0
      %443 = vmatprep.subr.bf16.mxu0 0
      %444 = vmatpush1.bf16.msra.mxu0 0
      %445 = vmatprep.subr.bf16.mxu0 0
      %446 = vmatpush1.bf16.msra.mxu0 0
      %447 = vmatprep.subr.bf16.mxu0 0
      %448 = vmatpush1.bf16.msra.mxu0 0
      %449 = vmatprep.subr.bf16.mxu0 0
      %450 = vmatpush1.bf16.msra.mxu0 0
      %451 = vmatprep.subr.bf16.mxu0 0
      %452 = vmatpush1.bf16.msra.mxu0 0
      %453 = vmatprep.mubr.bf16.mxu0 0
      %454 = vmatmul.mubr.bf16.gmra.mrb[0].mxu0 %v419
      %v455 = vpop.f32.mrb[0].mxu0
      %v456 = vadd.f32 %v405, %v455
      %v457 = vpop.f32.mrb[0].mxu0
      %v458 = vpop.f32.mrb[0].mxu0
      %v459 = vadd.f32 %v410, %v458
      %v460 = vpop.f32.mrb[0].mxu0
      %461 = vdwg.mxu0
      %v462 = vmax.f32 %v456, 0.0
      %v463 = vmax.f32 %v459, 0.0
      %v464 = vld [vmem:[%s5] sm:$0xf]
      %v465 = vld [vmem:[%s5 + $0x4] sm:$0xf]
      %v466 = vld [vmem:[%s6] sm:$0xff]
      %v467 = vld [vmem:[%s6 + $0x8] sm:$0xff]
      %469 = vset.pattern.permute.xlu0 0
      %470 = vperm.xlu0 %469, %v466
      %v471 = vpop.permute.xlu0 %470
      %474 = vset.pattern.permute.xlu0 0
      %475 = vperm.xlu0 %474, %v467
      %v476 = vpop.permute.xlu0 %475
      %v480 = vunpack.c.l.b16 %v464
      %v481 = vunpack.c.l.b16 %v465
      %v482 = vpack.c.b16 %v481, %v480
      %vm483 = vcmask 31744
      %v485 = vsel %vm483, %v482, 0
      %v488 = vsel %vm305, %v278, 0
      %490 = vmatprep.subr.bf16.mxu0 0
      %491 = vmatpush1.bf16.msra.mxu0 %v488
      %492 = vmatprep.subr.bf16.mxu0 0
      %493 = vmatpush1.bf16.msra.mxu0 0
      %494 = vmatprep.subr.bf16.mxu0 0
      %495 = vmatpush1.bf16.msra.mxu0 0
      %496 = vmatprep.subr.bf16.mxu0 0
      %497 = vmatpush1.bf16.msra.mxu0 0
      %498 = vmatprep.subr.bf16.mxu0 0
      %499 = vmatpush1.bf16.msra.mxu0 0
      %500 = vmatprep.subr.bf16.mxu0 0
      %501 = vmatpush1.bf16.msra.mxu0 0
      %502 = vmatprep.subr.bf16.mxu0 0
      %503 = vmatpush1.bf16.msra.mxu0 0
      %504 = vmatprep.subr.bf16.mxu0 0
      %505 = vmatpush1.bf16.msra.mxu0 0
      %506 = vmatprep.subr.bf16.mxu0 0
      %507 = vmatpush1.bf16.msra.mxu0 0
      %508 = vmatprep.subr.bf16.mxu0 0
      %509 = vmatpush1.bf16.msra.mxu0 0
      %510 = vmatprep.subr.bf16.mxu0 0
      %511 = vmatpush1.bf16.msra.mxu0 0
      %512 = vmatprep.subr.bf16.mxu0 0
      %513 = vmatpush1.bf16.msra.mxu0 0
      %514 = vmatprep.subr.bf16.mxu0 0
      %515 = vmatpush1.bf16.msra.mxu0 0
      %516 = vmatprep.subr.bf16.mxu0 0
      %517 = vmatpush1.bf16.msra.mxu0 0
      %518 = vmatprep.subr.bf16.mxu0 0
      %519 = vmatpush1.bf16.msra.mxu0 0
      %520 = vmatprep.subr.bf16.mxu0 0
      %521 = vmatpush1.bf16.msra.mxu0 0
      %522 = vmatprep.mubr.bf16.mxu0 0
      %523 = vmatmul.mubr.bf16.gmra.mrb[0].mxu0 %v485
      %v524 = vpop.f32.mrb[0].mxu0
      %v525 = vadd.f32 %v471, %v524
      %v526 = vpop.f32.mrb[0].mxu0
      %v527 = vpop.f32.mrb[0].mxu0
      %v528 = vadd.f32 %v476, %v527
      %v529 = vpop.f32.mrb[0].mxu0
      %530 = vdwg.mxu0
      %v531 = vadd.f32 %v462, %v525
      %v532 = vadd.f32 %v463, %v528
      %v533 = vmax.f32 %v531, 0.0
      %v534 = vmax.f32 %v532, 0.0
      %535 = vst [vmem:[%s275] sm:$0xff] %v533
      %536 = vst [vmem:[%s275 + $0x8] sm:$0xff] %v534
      %p537 = scmp.lt.s32.totalorder %s18, 1
      %s538 = scalar_select %p537, %s18, 1
      %s539 = smul.addr %s538, 2
      %s540 = smul.addr %s539, 8
      %s541 = scalar_lea.vmem %s7, %s540
      // Predicated region
      $region49: #{temporal_conv_net.3} parent=47 // pred_check
        %p542 = pneg %p188
      $region50: #{temporal_conv_net.3} parent=47 // pred_check_branch
        %544 = sbr.rel (%p542) target = $region52
      $region51: #{temporal_conv_net.3} parent=47 // pred_region
        _
      $region52: #{temporal_conv_net.3} parent=47 // pred_fallthru
        _
    $region48: #{temporal_conv_net.3} parent=5 // pred_fallthru
      _
    %p545 = scmp.le.s32.totalorder 2, %s13
    // Predicated region
    $region53: #{temporal_conv_net.3} parent=5 // pred_check
      %p546 = pneg %p545
    $region54: #{temporal_conv_net.3} parent=5 // pred_check_branch
      %548 = sbr.rel (%p546) target = $region56
    $region55: #{temporal_conv_net.3} parent=5 // pred_region
      %s549 = ssub.s32 %s13, 2
      // Predicated region
      $region57: #{temporal_conv_net.3} parent=55 // pred_check
        %p550 = pneg %p194
      $region58: #{temporal_conv_net.3} parent=55 // pred_check_branch
        %552 = sbr.rel (%p550) target = $region60
      $region59: #{temporal_conv_net.3} parent=55 // pred_region
        %p553 = scmp.lt.s32.totalorder %s19, 1
        %s554 = scalar_select %p553, %s19, 1
        %s555 = smul.addr %s554, 2
        %s556 = smul.addr %s555, 8
        %s557 = scalar_lea.vmem %s7, %s556
      $region60: #{temporal_conv_net.3} parent=55 // pred_fallthru
        _
    $region56: #{temporal_conv_net.3} parent=5 // pred_fallthru
      _
  $region6: #{temporal_conv_net.3} parent=0 // loop_footer
    %s17 = sadd.s32 1, %s13
  $region7: #{temporal_conv_net.3} parent=0 // loop_footer_branch
    %12 = sbr.rel target = $region3
  $region8: #{temporal_conv_net.3} parent=0 // loop_exit
    _

// kernel: temporal_conv_net.4
$region0: #{temporal_conv_net.4}
  #allocation0 [shape = 'u32[]', space=smem, size = 0x4, offset = 0x4, fixed_abs, tag = 'smem constant byte address 0x4 - core index']
  #allocation1 [shape = 'u32[144,128]{1,0:T(1,128)}', space=vmem, size = 0x12000, scoped, tag = 'internal scratch']
  %s0 = inlined_call_operand.vmem [shape: f32[2,16,128], index: 0, kind: input, shape index: {}]
  %s1 = inlined_call_operand.vmem [shape: bf16[16,48], index: 1, kind: input, shape index: {}]
  %s2 = inlined_call_operand.vmem [shape: f32[16,1], index: 2, kind: input, shape index: {}]
  %s3 = inlined_call_operand.vmem [shape: bf16[16,48], index: 3, kind: input, shape index: {}]
  %s4 = inlined_call_operand.vmem [shape: f32[16,1], index: 4, kind: input, shape index: {}]
  %s5 = inlined_call_operand.vmem [shape: f32[2,16,128], index: 5, kind: output, shape index: {}]
  %s6 = sld [smem:[#allocation0]]
  $region53: #{temporal_conv_net.4} parent=0
    _
  %s8 = ssub.s32 1, %s6
  %s9 = scalar_select 0, %s8, %s6
  loop: start=0, step=1, limit=4
  $region2: #{temporal_conv_net.4} parent=0 // loop_pre_header
    _
  $region3: #{temporal_conv_net.4} parent=0 // loop_header
    %s11 = sphi 0, %s15
    %p12 = scmp.ge.s32.totalorder %s11, 4
    %s21 = sphi 0, %s23
    %s24 = sphi 0, %s21
    %s25 = sphi 0, %s24
    %s41 = sphi 0, %s25
    %s45 = sphi 0, %s45
    %s47 = sphi 0, %s45
    %s48 = sphi 0, %s47
    %s62 = sphi 0, %s48
    %s66 = sphi 0, %s66
    %s68 = sphi 0, %s66
    %s69 = sphi 0, %s68
    %s83 = sphi 0, %s69
    %s87 = sphi 0, %s87
    %s89 = sphi 0, %s87
    %s90 = sphi 0, %s89
    %s104 = sphi 0, %s90
    %s108 = sphi 0, %s108
    %s110 = sphi 0, %s108
    %s111 = sphi 0, %s110
    %s125 = sphi 0, %s111
    %s131 = sphi 0, %s133
    %s134 = sphi 0, %s131
    %s135 = sphi 0, %s134
    %s151 = sphi 0, %s135
  $region4: #{temporal_conv_net.4} parent=0 // loop_header_branch
    %14 = sbr.rel (%p12) target = $region8
  $region5: #{temporal_conv_net.4} parent=0 // loop_body
    %s16 = ssub.s32 %s11, 1
    %s17 = ssub.s32 %s11, 2
    %s18 = sadd.s32 %s11, 1
    %s19 = ssub.s32 %s11, %s18
    %p20 = scmp.eq.s32.totalorder %s19, 0
    %s22 = sadd.s32 %s21, 1
    %s23 = scalar_select %p20, %s21, %s22
    %p26 = pneg %p20
    %p27 = scmp.eq.s32.totalorder %s11, 1
    %p28 = por %p26, %p27
    %p29 = scmp.ne.s32.totalorder %s21, %s24
    %p30 = scmp.eq.s32.totalorder %s11, 0
    %p31 = por %p29, %p30
    %p32 = scmp.ne.s32.totalorder %s21, %s24
    %p33 = scmp.eq.s32.totalorder %s16, 1
    %p34 = por %p32, %p33
    %p35 = scmp.ne.s32.totalorder %s24, %s25
    %p36 = scmp.eq.s32.totalorder %s16, 0
    %p37 = por %p35, %p36
    %p38 = scmp.ne.s32.totalorder %s24, %s25
    %p39 = scmp.eq.s32.totalorder %s17, 1
    %p40 = por %p38, %p39
    %p42 = scmp.ne.s32.totalorder %s25, %s41
    %p43 = scmp.eq.s32.totalorder %s17, 0
    %p44 = por %p42, %p43
    %s46 = sadd.s32 %s45, 1
    %p49 = scmp.eq.s32.totalorder %s11, 1
    %p50 = scmp.ne.s32.totalorder %s45, %s47
    %p51 = scmp.eq.s32.totalorder %s11, 0
    %p52 = por %p50, %p51
    %p53 = scmp.ne.s32.totalorder %s45, %s47
    %p54 = scmp.eq.s32.totalorder %s16, 1
    %p55 = por %p53, %p54
    %p56 = scmp.ne.s32.totalorder %s47, %s48
    %p57 = scmp.eq.s32.totalorder %s16, 0
    %p58 = por %p56, %p57
    %p59 = scmp.ne.s32.totalorder %s47, %s48
    %p60 = scmp.eq.s32.totalorder %s17, 1
    %p61 = por %p59, %p60
    %p63 = scmp.ne.s32.totalorder %s48, %s62
    %p64 = scmp.eq.s32.totalorder %s17, 0
    %p65 = por %p63, %p64
    %s67 = sadd.s32 %s66, 1
    %p70 = scmp.eq.s32.totalorder %s11, 1
    %p71 = scmp.ne.s32.totalorder %s66, %s68
    %p72 = scmp.eq.s32.totalorder %s11, 0
    %p73 = por %p71, %p72
    %p74 = scmp.ne.s32.totalorder %s66, %s68
    %p75 = scmp.eq.s32.totalorder %s16, 1
    %p76 = por %p74, %p75
    %p77 = scmp.ne.s32.totalorder %s68, %s69
    %p78 = scmp.eq.s32.totalorder %s16, 0
    %p79 = por %p77, %p78
    %p80 = scmp.ne.s32.totalorder %s68, %s69
    %p81 = scmp.eq.s32.totalorder %s17, 1
    %p82 = por %p80, %p81
    %p84 = scmp.ne.s32.totalorder %s69, %s83
    %p85 = scmp.eq.s32.totalorder %s17, 0
    %p86 = por %p84, %p85
    %s88 = sadd.s32 %s87, 1
    %p91 = scmp.eq.s32.totalorder %s11, 1
    %p92 = scmp.ne.s32.totalorder %s87, %s89
    %p93 = scmp.eq.s32.totalorder %s11, 0
    %p94 = por %p92, %p93
    %p95 = scmp.ne.s32.totalorder %s87, %s89
    %p96 = scmp.eq.s32.totalorder %s16, 1
    %p97 = por %p95, %p96
    %p98 = scmp.ne.s32.totalorder %s89, %s90
    %p99 = scmp.eq.s32.totalorder %s16, 0
    %p100 = por %p98, %p99
    %p101 = scmp.ne.s32.totalorder %s89, %s90
    %p102 = scmp.eq.s32.totalorder %s17, 1
    %p103 = por %p101, %p102
    %p105 = scmp.ne.s32.totalorder %s90, %s104
    %p106 = scmp.eq.s32.totalorder %s17, 0
    %p107 = por %p105, %p106
    %s109 = sadd.s32 %s108, 1
    %p112 = scmp.eq.s32.totalorder %s11, 1
    %p113 = scmp.ne.s32.totalorder %s108, %s110
    %p114 = scmp.eq.s32.totalorder %s11, 0
    %p115 = por %p113, %p114
    %p116 = scmp.ne.s32.totalorder %s108, %s110
    %p117 = scmp.eq.s32.totalorder %s16, 1
    %p118 = por %p116, %p117
    %p119 = scmp.ne.s32.totalorder %s110, %s111
    %p120 = scmp.eq.s32.totalorder %s16, 0
    %p121 = por %p119, %p120
    %p122 = scmp.ne.s32.totalorder %s110, %s111
    %p123 = scmp.eq.s32.totalorder %s17, 1
    %p124 = por %p122, %p123
    %p126 = scmp.ne.s32.totalorder %s111, %s125
    %p127 = scmp.eq.s32.totalorder %s17, 0
    %p128 = por %p126, %p127
    %s129 = ssub.s32 %s11, %s18
    %p130 = scmp.eq.s32.totalorder %s129, 0
    %s132 = sadd.s32 %s131, 1
    %s133 = scalar_select %p130, %s131, %s132
    %p136 = pneg %p130
    %p137 = scmp.eq.s32.totalorder %s11, 1
    %p138 = por %p136, %p137
    %p139 = scmp.ne.s32.totalorder %s131, %s134
    %p140 = scmp.eq.s32.totalorder %s11, 0
    %p141 = por %p139, %p140
    %p142 = scmp.ne.s32.totalorder %s131, %s134
    %p143 = scmp.eq.s32.totalorder %s16, 1
    %p144 = por %p142, %p143
    %p145 = scmp.ne.s32.totalorder %s134, %s135
    %p146 = scmp.eq.s32.totalorder %s16, 0
    %p147 = por %p145, %p146
    %p148 = scmp.ne.s32.totalorder %s134, %s135
    %p149 = scmp.eq.s32.totalorder %s17, 1
    %p150 = por %p148, %p149
    %p152 = scmp.ne.s32.totalorder %s135, %s151
    %p153 = scmp.eq.s32.totalorder %s17, 0
    %p154 = por %p152, %p153
    %p155 = scmp.le.s32.totalorder 1, %s11
    %p156 = scmp.lt.s32.totalorder %s11, 3
    %p157 = pnand %p155, %p156
    %p158 = pneg %p157
    // Predicated region
    $region9: #{temporal_conv_net.4} parent=5 // pred_check
      _
    $region10: #{temporal_conv_net.4} parent=5 // pred_check_branch
      %160 = sbr.rel (%p157) target = $region12
    $region11: #{temporal_conv_net.4} parent=5 // pred_region
      %s161 = ssub.s32 %s11, 1
      // Predicated region
      $region13: #{temporal_conv_net.4} parent=11 // pred_check
        %p162 = pneg %p58
      $region14: #{temporal_conv_net.4} parent=11 // pred_check_branch
        %164 = sbr.rel (%p162) target = $region16
      $region15: #{temporal_conv_net.4} parent=11 // pred_region
        _
      $region16: #{temporal_conv_net.4} parent=11 // pred_fallthru
        _
      // Predicated region
      $region17: #{temporal_conv_net.4} parent=11 // pred_check
        %p165 = pneg %p79
      $region18: #{temporal_conv_net.4} parent=11 // pred_check_branch
        %167 = sbr.rel (%p165) target = $region20
      $region19: #{temporal_conv_net.4} parent=11 // pred_region
        _
      $region20: #{temporal_conv_net.4} parent=11 // pred_fallthru
        _
      // Predicated region
      $region21: #{temporal_conv_net.4} parent=11 // pred_check
        %p168 = pneg %p100
      $region22: #{temporal_conv_net.4} parent=11 // pred_check_branch
        %170 = sbr.rel (%p168) target = $region24
      $region23: #{temporal_conv_net.4} parent=11 // pred_region
        _
      $region24: #{temporal_conv_net.4} parent=11 // pred_fallthru
        _
      // Predicated region
      $region25: #{temporal_conv_net.4} parent=11 // pred_check
        %p171 = pneg %p121
      $region26: #{temporal_conv_net.4} parent=11 // pred_check_branch
        %173 = sbr.rel (%p171) target = $region28
      $region27: #{temporal_conv_net.4} parent=11 // pred_region
        _
      $region28: #{temporal_conv_net.4} parent=11 // pred_fallthru
        _
    $region12: #{temporal_conv_net.4} parent=5 // pred_fallthru
      _
    %p174 = scmp.lt.s32.totalorder %s11, 2
    // Predicated region
    $region29: #{temporal_conv_net.4} parent=5 // pred_check
      %p175 = pneg %p174
    $region30: #{temporal_conv_net.4} parent=5 // pred_check_branch
      %177 = sbr.rel (%p175) target = $region32
    $region31: #{temporal_conv_net.4} parent=5 // pred_region
      // Predicated region
      $region33: #{temporal_conv_net.4} parent=31 // pred_check
        %p178 = pneg %p31
      $region34: #{temporal_conv_net.4} parent=31 // pred_check_branch
        %180 = sbr.rel (%p178) target = $region36
      $region35: #{temporal_conv_net.4} parent=31 // pred_region
        %p181 = scmp.lt.s32.totalorder %s11, 1
        %s182 = scalar_select %p181, %s11, 1
        %s183 = smul.addr %s182, 2
        %s184 = smul.addr %s183, 8
        %s185 = scalar_lea.vmem %s0, %s184
      $region36: #{temporal_conv_net.4} parent=31 // pred_fallthru
        _
    $region32: #{temporal_conv_net.4} parent=5 // pred_fallthru
      _
    %p186 = scmp.le.s32.totalorder 1, %s11
    %p187 = scmp.lt.s32.totalorder %s11, 3
    %p188 = pnand %p186, %p187
    %p189 = pneg %p188
    // Predicated region
    $region37: #{temporal_conv_net.4} parent=5 // pred_check
      _
    $region38: #{temporal_conv_net.4} parent=5 // pred_check_branch
      %191 = sbr.rel (%p188) target = $region40
    $region39: #{temporal_conv_net.4} parent=5 // pred_region
      %s192 = ssub.s32 %s11, 1
      %p193 = scmp.lt.s32.totalorder %s16, 1
      %s194 = scalar_select %p193, %s16, 1
      %s195 = smul.addr %s194, 2
      %s196 = smul.addr %s195, 8
      %s197 = scalar_lea.vmem %s0, %s196
      %p198 = pneg %p37
      %p199 = pneg %p34
      %p200 = pneg %p58
      %p201 = pneg %p55
      %p202 = pneg %p79
      %p203 = pneg %p76
      %p204 = pneg %p100
      %p205 = pneg %p97
      %p206 = pneg %p121
      %p207 = pneg %p118
      %p208 = pneg %p147
      %p209 = pneg %p144
      %p210 = scmp.lt.s32.totalorder %s16, 1
      %s211 = scalar_select %p210, %s16, 1
      %s212 = smul.addr %s211, 2
      %s213 = smul.addr %s212, 8
      %s214 = scalar_lea.vmem %s5, %s213
      %p215 = scmp.lt.s32.totalorder %s16, 1
      %s216 = scalar_select %p215, %s16, 1
      %s217 = smul.addr %s216, 2
      %s218 = smul.addr %s217, 8
      %s219 = scalar_lea.vmem %s0, %s218
      %p220 = scmp.lt.s32.totalorder %s16, 1
      %s221 = scalar_select %p220, %s16, 1
      %s222 = smul.addr %s221, 2
      %s223 = smul.addr %s222, 8
      %s224 = scalar_lea.vmem %s5, %s223
      %v226 = vld [vmem:[%s219] sm:$0xff]
      %v227 = vld [vmem:[%s219 + $0x8] sm:$0xff]
      %v228 = vpack.c.bf16 %v227, %v226
      %v229 = vld [vmem:[%s1] sm:$0xf]
      %v230 = vld [vmem:[%s1 + $0x4] sm:$0xf]
      %232 = vrot.lane.b32.xlu0 %v228, 4
      %v233 = vpop.permute.xlu0 %232
      %vm234 = vcmask 31744
      %v237 = vsel %vm234, 0, %v233
      %240 = vrot.lane.b32.xlu0 %v237, 126
      %v241 = vpop.permute.xlu0 %240
      %242 = vrot.lane.b32.xlu0 %v233, 126
      %v243 = vpop.permute.xlu0 %242
      %vm244 = vcmask 1031168
      %v245 = vsel %vm244, %v241, %v243
      %247 = vrot.lane.b32.xlu0 %v237, 124
      %v248 = vpop.permute.xlu0 %247
      %249 = vrot.lane.b32.xlu0 %v233, 124
      %v250 = vpop.permute.xlu0 %249
      %vm251 = vcmask 1014784
      %v252 = vsel %vm251, %v248, %v250
      %v254 = vld [vmem:[%s2] sm:$0xff]
      %v255 = vld [vmem:[%s2 + $0x8] sm:$0xff]
      %257 = vset.pattern.permute.xlu0 0
      %258 = vperm.xlu0 %257, %v254
      %v259 = vpop.permute.xlu0 %258
      %262 = vset.pattern.permute.xlu0 0
      %263 = vperm.xlu0 %262, %v255
      %v264 = vpop.permute.xlu0 %263
      %v268 = vunpack.c.l.b16 %v229
      %v269 = vunpack.c.l.b16 %v230
      %v270 = vpack.c.b16 %v269, %v268
      %vm271 = vcmask 392192
      %v273 = vsel %vm271, %v270, 0
      %275 = vmatprep.subr.bf16.mxu0 0
      %276 = vmatpush1.bf16.msra.mxu0 %v237
      %277 = vmatprep.subr.bf16.mxu0 0
      %278 = vmatpush1.bf16.msra.mxu0 %v245
      %279 = vmatprep.subr.bf16.mxu0 0
      %280 = vmatpush1.bf16.msra.mxu0 %v252
      %281 = vmatprep.subr.bf16.mxu0 0
      %282 = vmatpush1.bf16.msra.mxu0 0
      %283 = vmatprep.subr.bf16.mxu0 0
      %284 = vmatpush1.bf16.msra.mxu0 0
      %285 = vmatprep.subr.bf16.mxu0 0
      %286 = vmatpush1.bf16.msra.mxu0 0
      %287 = vmatprep.subr.bf16.mxu0 0
      %288 = vmatpush1.bf16.msra.mxu0 0
      %289 = vmatprep.subr.bf16.mxu0 0
      %290 = vmatpush1.bf16.msra.mxu0 0
      %291 = vmatprep.subr.bf16.mxu0 0
      %292 = vmatpush1.bf16.msra.mxu0 0
      %293 = vmatprep.subr.bf16.mxu0 0
      %294 = vmatpush1.bf16.msra.mxu0 0
      %295 = vmatprep.subr.bf16.mxu0 0
      %296 = vmatpush1.bf16.msra.mxu0 0
      %297 = vmatprep.subr.bf16.mxu0 0
      %298 = vmatpush1.bf16.msra.mxu0 0
      %299 = vmatprep.subr.bf16.mxu0 0
      %300 = vmatpush1.bf16.msra.mxu0 0
      %301 = vmatprep.subr.bf16.mxu0 0
      %302 = vmatpush1.bf16.msra.mxu0 0
      %303 = vmatprep.subr.bf16.mxu0 0
      %304 = vmatpush1.bf16.msra.mxu0 0
      %305 = vmatprep.subr.bf16.mxu0 0
      %306 = vmatpush1.bf16.msra.mxu0 0
      %307 = vmatprep.mubr.bf16.mxu0 0
      %308 = vmatmul.mubr.bf16.gmra.mrb[0].mxu0 %v273
      %v309 = vpop.f32.mrb[0].mxu0
      %v310 = vadd.f32 %v259, %v309
      %v311 = vpop.f32.mrb[0].mxu0
      %v312 = vpop.f32.mrb[0].mxu0
      %v313 = vadd.f32 %v264, %v312
      %v314 = vpop.f32.mrb[0].mxu0
      %315 = vdwg.mxu0
      %v316 = vmax.f32 %v310, 0.0
      %v317 = vmax.f32 %v313, 0.0
      %v318 = vld [vmem:[%s3] sm:$0xf]
      %v319 = vld [vmem:[%s3 + $0x4] sm:$0xf]
      %v320 = vpack.c.bf16 %v317, %v316
      %322 = vrot.lane.b32.xlu0 %v320, 4
      %v323 = vpop.permute.xlu0 %322
      %v325 = vsel %vm234, 0, %v323
      %328 = vrot.lane.b32.xlu0 %v325, 126
      %v329 = vpop.permute.xlu0 %328
      %330 = vrot.lane.b32.xlu0 %v323, 126
      %v331 = vpop.permute.xlu0 %330
      %v332 = vsel %vm244, %v329, %v331
      %334 = vrot.lane.b32.xlu0 %v325, 124
      %v335 = vpop.permute.xlu0 %334
      %336 = vrot.lane.b32.xlu0 %v323, 124
      %v337 = vpop.permute.xlu0 %336
      %v338 = vsel %vm251, %v335, %v337
      %v340 = vld [vmem:[%s4] sm:$0xff]
      %v341 = vld [vmem:[%s4 + $0x8] sm:$0xff]
      %343 = vset.pattern.permute.xlu0 0
      %344 = vperm.xlu0 %343, %v340
      %v345 = vpop.permute.xlu0 %344
      %348 = vset.pattern.permute.xlu0 0
      %349 = vperm.xlu0 %348, %v341
      %v350 = vpop.permute.xlu0 %349
      %v354 = vunpack.c.l.b16 %v318
      %v355 = vunpack.c.l.b16 %v319
      %v356 = vpack.c.b16 %v355, %v354
      %v358 = vsel %vm271, %v356, 0
      %360 = vmatprep.subr.bf16.mxu0 0
      %361 = vmatpush1.bf16.msra.mxu0 %v325
      %362 = vmatprep.subr.bf16.mxu0 0
      %363 = vmatpush1.bf16.msra.mxu0 %v332
      %364 = vmatprep.subr.bf16.mxu0 0
      %365 = vmatpush1.bf16.msra.mxu0 %v338
      %366 = vmatprep.subr.bf16.mxu0 0
      %367 = vmatpush1.bf16.msra.mxu0 0
      %368 = vmatprep.subr.bf16.mxu0 0
      %369 = vmatpush1.bf16.msra.mxu0 0
      %370 = vmatprep.subr.bf16.mxu0 0
      %371 = vmatpush1.bf16.msra.mxu0 0
      %372 = vmatprep.subr.bf16.mxu0 0
      %373 = vmatpush1.bf16.msra.mxu0 0
      %374 = vmatprep.subr.bf16.mxu0 0
      %375 = vmatpush1.bf16.msra.mxu0 0
      %376 = vmatprep.subr.bf16.mxu0 0
      %377 = vmatpush1.bf16.msra.mxu0 0
      %378 = vmatprep.subr.bf16.mxu0 0
      %379 = vmatpush1.bf16.msra.mxu0 0
      %380 = vmatprep.subr.bf16.mxu0 0
      %381 = vmatpush1.bf16.msra.mxu0 0
      %382 = vmatprep.subr.bf16.mxu0 0
      %383 = vmatpush1.bf16.msra.mxu0 0
      %384 = vmatprep.subr.bf16.mxu0 0
      %385 = vmatpush1.bf16.msra.mxu0 0
      %386 = vmatprep.subr.bf16.mxu0 0
      %387 = vmatpush1.bf16.msra.mxu0 0
      %388 = vmatprep.subr.bf16.mxu0 0
      %389 = vmatpush1.bf16.msra.mxu0 0
      %390 = vmatprep.subr.bf16.mxu0 0
      %391 = vmatpush1.bf16.msra.mxu0 0
      %392 = vmatprep.mubr.bf16.mxu0 0
      %393 = vmatmul.mubr.bf16.gmra.mrb[0].mxu0 %v358
      %v394 = vpop.f32.mrb[0].mxu0
      %v395 = vadd.f32 %v345, %v394
      %v396 = vpop.f32.mrb[0].mxu0
      %v397 = vpop.f32.mrb[0].mxu0
      %v398 = vadd.f32 %v350, %v397
      %v399 = vpop.f32.mrb[0].mxu0
      %400 = vdwg.mxu0
      %v401 = vmax.f32 %v395, 0.0
      %v402 = vmax.f32 %v398, 0.0
      %v403 = vadd.f32 %v401, %v226
      %v404 = vadd.f32 %v402, %v227
      %v405 = vmax.f32 %v403, 0.0
      %v406 = vmax.f32 %v404, 0.0
      %407 = vst [vmem:[%s224] sm:$0xff] %v405
      %408 = vst [vmem:[%s224 + $0x8] sm:$0xff] %v406
      %p409 = scmp.lt.s32.totalorder %s16, 1
      %s410 = scalar_select %p409, %s16, 1
      %s411 = smul.addr %s410, 2
      %s412 = smul.addr %s411, 8
      %s413 = scalar_lea.vmem %s5, %s412
      // Predicated region
      $region41: #{temporal_conv_net.4} parent=39 // pred_check
        %p414 = pneg %p144
      $region42: #{temporal_conv_net.4} parent=39 // pred_check_branch
        %416 = sbr.rel (%p414) target = $region44
      $region43: #{temporal_conv_net.4} parent=39 // pred_region
        _
      $region44: #{temporal_conv_net.4} parent=39 // pred_fallthru
        _
    $region40: #{temporal_conv_net.4} parent=5 // pred_fallthru
      _
    %p417 = scmp.le.s32.totalorder 2, %s11
    // Predicated region
    $region45: #{temporal_conv_net.4} parent=5 // pred_check
      %p418 = pneg %p417
    $region46: #{temporal_conv_net.4} parent=5 // pred_check_branch
      %420 = sbr.rel (%p418) target = $region48
    $region47: #{temporal_conv_net.4} parent=5 // pred_region
      %s421 = ssub.s32 %s11, 2
      // Predicated region
      $region49: #{temporal_conv_net.4} parent=47 // pred_check
        %p422 = pneg %p150
      $region50: #{temporal_conv_net.4} parent=47 // pred_check_branch
        %424 = sbr.rel (%p422) target = $region52
      $region51: #{temporal_conv_net.4} parent=47 // pred_region
        %p425 = scmp.lt.s32.totalorder %s17, 1
        %s426 = scalar_select %p425, %s17, 1
        %s427 = smul.addr %s426, 2
        %s428 = smul.addr %s427, 8
        %s429 = scalar_lea.vmem %s5, %s428
      $region52: #{temporal_conv_net.4} parent=47 // pred_fallthru
        _
    $region48: #{temporal_conv_net.4} parent=5 // pred_fallthru
      _
  $region6: #{temporal_conv_net.4} parent=0 // loop_footer
    %s15 = sadd.s32 1, %s11
  $region7: #{temporal_conv_net.4} parent=0 // loop_footer_branch
    %10 = sbr.rel target = $region3
  $region8: #{temporal_conv_net.4} parent=0 // loop_exit
    _

// kernel: temporal_conv_net.5
$region0: #{temporal_conv_net.5}
  #allocation0 [shape = 'u32[]', space=smem, size = 0x4, offset = 0x4, fixed_abs, tag = 'smem constant byte address 0x4 - core index']
  #allocation1 [shape = 'u32[144,128]{1,0:T(1,128)}', space=vmem, size = 0x12000, scoped, tag = 'internal scratch']
  %s0 = inlined_call_operand.vmem [shape: f32[2,16,128], index: 0, kind: input, shape index: {}]
  %s1 = inlined_call_operand.vmem [shape: bf16[8,48], index: 1, kind: input, shape index: {}]
  %s2 = inlined_call_operand.vmem [shape: f32[8,1], index: 2, kind: input, shape index: {}]
  %s3 = inlined_call_operand.vmem [shape: bf16[8,24], index: 3, kind: input, shape index: {}]
  %s4 = inlined_call_operand.vmem [shape: f32[8,1], index: 4, kind: input, shape index: {}]
  %s5 = inlined_call_operand.vmem [shape: bf16[8,16], index: 5, kind: input, shape index: {}]
  %s6 = inlined_call_operand.vmem [shape: f32[8,1], index: 6, kind: input, shape index: {}]
  %s7 = inlined_call_operand.hbm [shape: f32[2,8,128], index: 7, kind: output, shape index: {}]
  %s8 = sld [smem:[#allocation0]]
  $region61: #{temporal_conv_net.5} parent=0
    _
  %s10 = ssub.s32 1, %s8
  %s11 = scalar_select 0, %s10, %s8
  $region1: #{temporal_conv_net.5} parent=0
    #allocation2 [shape = 'u8[8192]{0}', space=vmem, size = 0x2000, scoped, tag = 'output window, operand 0']
    #allocation3 [shape = 's32[2]{0}', space=sflag, size = 0x8, scoped, tag = 'scoped memory for temporal_conv_net.5']
    %12 = vsyncpa [#allocation3], 0
    %s13 = scalar_lea.sflag [#allocation3], 1
    %14 = vsyncpa %s13, 0
    loop: start=0, step=1, limit=4
    $region2: #{temporal_conv_net.5} parent=1 // loop_pre_header
      _
    $region3: #{temporal_conv_net.5} parent=1 // loop_header
      %s16 = sphi 0, %s20
      %p17 = scmp.ge.s32.totalorder %s16, 4
      %s26 = sphi 0, %s28
      %s29 = sphi 0, %s26
      %s30 = sphi 0, %s29
      %s46 = sphi 0, %s30
      %s50 = sphi 0, %s50
      %s52 = sphi 0, %s50
      %s53 = sphi 0, %s52
      %s67 = sphi 0, %s53
      %s71 = sphi 0, %s71
      %s73 = sphi 0, %s71
      %s74 = sphi 0, %s73
      %s88 = sphi 0, %s74
      %s92 = sphi 0, %s92
      %s94 = sphi 0, %s92
      %s95 = sphi 0, %s94
      %s109 = sphi 0, %s95
      %s113 = sphi 0, %s113
      %s115 = sphi 0, %s113
      %s116 = sphi 0, %s115
      %s130 = sphi 0, %s116
      %s134 = sphi 0, %s134
      %s136 = sphi 0, %s134
      %s137 = sphi 0, %s136
      %s151 = sphi 0, %s137
      %s155 = sphi 0, %s155
      %s157 = sphi 0, %s155
      %s158 = sphi 0, %s157
      %s172 = sphi 0, %s158
      %s178 = sphi 0, %s180
      %s181 = sphi 0, %s178
      %s182 = sphi 0, %s181
      %s198 = sphi 0, %s182
    $region4: #{temporal_conv_net.5} parent=1 // loop_header_branch
      %19 = sbr.rel (%p17) target = $region8
    $region5: #{temporal_conv_net.5} parent=1 // loop_body
      %s21 = ssub.s32 %s16, 1
      %s22 = ssub.s32 %s16, 2
      %s23 = sadd.s32 %s16, 1
      %s24 = ssub.s32 %s16, %s23
      %p25 = scmp.eq.s32.totalorder %s24, 0
      %s27 = sadd.s32 %s26, 1
      %s28 = scalar_select %p25, %s26, %s27
      %p31 = pneg %p25
      %p32 = scmp.eq.s32.totalorder %s16, 1
      %p33 = por %p31, %p32
      %p34 = scmp.ne.s32.totalorder %s26, %s29
      %p35 = scmp.eq.s32.totalorder %s16, 0
      %p36 = por %p34, %p35
      %p37 = scmp.ne.s32.totalorder %s26, %s29
      %p38 = scmp.eq.s32.totalorder %s21, 1
      %p39 = por %p37, %p38
      %p40 = scmp.ne.s32.totalorder %s29, %s30
      %p41 = scmp.eq.s32.totalorder %s21, 0
      %p42 = por %p40, %p41
      %p43 = scmp.ne.s32.totalorder %s29, %s30
      %p44 = scmp.eq.s32.totalorder %s22, 1
      %p45 = por %p43, %p44
      %p47 = scmp.ne.s32.totalorder %s30, %s46
      %p48 = scmp.eq.s32.totalorder %s22, 0
      %p49 = por %p47, %p48
      %s51 = sadd.s32 %s50, 1
      %p54 = scmp.eq.s32.totalorder %s16, 1
      %p55 = scmp.ne.s32.totalorder %s50, %s52
      %p56 = scmp.eq.s32.totalorder %s16, 0
      %p57 = por %p55, %p56
      %p58 = scmp.ne.s32.totalorder %s50, %s52
      %p59 = scmp.eq.s32.totalorder %s21, 1
      %p60 = por %p58, %p59
      %p61 = scmp.ne.s32.totalorder %s52, %s53
      %p62 = scmp.eq.s32.totalorder %s21, 0
      %p63 = por %p61, %p62
      %p64 = scmp.ne.s32.totalorder %s52, %s53
      %p65 = scmp.eq.s32.totalorder %s22, 1
      %p66 = por %p64, %p65
      %p68 = scmp.ne.s32.totalorder %s53, %s67
      %p69 = scmp.eq.s32.totalorder %s22, 0
      %p70 = por %p68, %p69
      %s72 = sadd.s32 %s71, 1
      %p75 = scmp.eq.s32.totalorder %s16, 1
      %p76 = scmp.ne.s32.totalorder %s71, %s73
      %p77 = scmp.eq.s32.totalorder %s16, 0
      %p78 = por %p76, %p77
      %p79 = scmp.ne.s32.totalorder %s71, %s73
      %p80 = scmp.eq.s32.totalorder %s21, 1
      %p81 = por %p79, %p80
      %p82 = scmp.ne.s32.totalorder %s73, %s74
      %p83 = scmp.eq.s32.totalorder %s21, 0
      %p84 = por %p82, %p83
      %p85 = scmp.ne.s32.totalorder %s73, %s74
      %p86 = scmp.eq.s32.totalorder %s22, 1
      %p87 = por %p85, %p86
      %p89 = scmp.ne.s32.totalorder %s74, %s88
      %p90 = scmp.eq.s32.totalorder %s22, 0
      %p91 = por %p89, %p90
      %s93 = sadd.s32 %s92, 1
      %p96 = scmp.eq.s32.totalorder %s16, 1
      %p97 = scmp.ne.s32.totalorder %s92, %s94
      %p98 = scmp.eq.s32.totalorder %s16, 0
      %p99 = por %p97, %p98
      %p100 = scmp.ne.s32.totalorder %s92, %s94
      %p101 = scmp.eq.s32.totalorder %s21, 1
      %p102 = por %p100, %p101
      %p103 = scmp.ne.s32.totalorder %s94, %s95
      %p104 = scmp.eq.s32.totalorder %s21, 0
      %p105 = por %p103, %p104
      %p106 = scmp.ne.s32.totalorder %s94, %s95
      %p107 = scmp.eq.s32.totalorder %s22, 1
      %p108 = por %p106, %p107
      %p110 = scmp.ne.s32.totalorder %s95, %s109
      %p111 = scmp.eq.s32.totalorder %s22, 0
      %p112 = por %p110, %p111
      %s114 = sadd.s32 %s113, 1
      %p117 = scmp.eq.s32.totalorder %s16, 1
      %p118 = scmp.ne.s32.totalorder %s113, %s115
      %p119 = scmp.eq.s32.totalorder %s16, 0
      %p120 = por %p118, %p119
      %p121 = scmp.ne.s32.totalorder %s113, %s115
      %p122 = scmp.eq.s32.totalorder %s21, 1
      %p123 = por %p121, %p122
      %p124 = scmp.ne.s32.totalorder %s115, %s116
      %p125 = scmp.eq.s32.totalorder %s21, 0
      %p126 = por %p124, %p125
      %p127 = scmp.ne.s32.totalorder %s115, %s116
      %p128 = scmp.eq.s32.totalorder %s22, 1
      %p129 = por %p127, %p128
      %p131 = scmp.ne.s32.totalorder %s116, %s130
      %p132 = scmp.eq.s32.totalorder %s22, 0
      %p133 = por %p131, %p132
      %s135 = sadd.s32 %s134, 1
      %p138 = scmp.eq.s32.totalorder %s16, 1
      %p139 = scmp.ne.s32.totalorder %s134, %s136
      %p140 = scmp.eq.s32.totalorder %s16, 0
      %p141 = por %p139, %p140
      %p142 = scmp.ne.s32.totalorder %s134, %s136
      %p143 = scmp.eq.s32.totalorder %s21, 1
      %p144 = por %p142, %p143
      %p145 = scmp.ne.s32.totalorder %s136, %s137
      %p146 = scmp.eq.s32.totalorder %s21, 0
      %p147 = por %p145, %p146
      %p148 = scmp.ne.s32.totalorder %s136, %s137
      %p149 = scmp.eq.s32.totalorder %s22, 1
      %p150 = por %p148, %p149
      %p152 = scmp.ne.s32.totalorder %s137, %s151
      %p153 = scmp.eq.s32.totalorder %s22, 0
      %p154 = por %p152, %p153
      %s156 = sadd.s32 %s155, 1
      %p159 = scmp.eq.s32.totalorder %s16, 1
      %p160 = scmp.ne.s32.totalorder %s155, %s157
      %p161 = scmp.eq.s32.totalorder %s16, 0
      %p162 = por %p160, %p161
      %p163 = scmp.ne.s32.totalorder %s155, %s157
      %p164 = scmp.eq.s32.totalorder %s21, 1
      %p165 = por %p163, %p164
      %p166 = scmp.ne.s32.totalorder %s157, %s158
      %p167 = scmp.eq.s32.totalorder %s21, 0
      %p168 = por %p166, %p167
      %p169 = scmp.ne.s32.totalorder %s157, %s158
      %p170 = scmp.eq.s32.totalorder %s22, 1
      %p171 = por %p169, %p170
      %p173 = scmp.ne.s32.totalorder %s158, %s172
      %p174 = scmp.eq.s32.totalorder %s22, 0
      %p175 = por %p173, %p174
      %s176 = ssub.s32 %s16, %s23
      %p177 = scmp.eq.s32.totalorder %s176, 0
      %s179 = sadd.s32 %s178, 1
      %s180 = scalar_select %p177, %s178, %s179
      %p183 = pneg %p177
      %p184 = scmp.eq.s32.totalorder %s16, 1
      %p185 = por %p183, %p184
      %p186 = scmp.ne.s32.totalorder %s178, %s181
      %p187 = scmp.eq.s32.totalorder %s16, 0
      %p188 = por %p186, %p187
      %p189 = scmp.ne.s32.totalorder %s178, %s181
      %p190 = scmp.eq.s32.totalorder %s21, 1
      %p191 = por %p189, %p190
      %p192 = scmp.ne.s32.totalorder %s181, %s182
      %p193 = scmp.eq.s32.totalorder %s21, 0
      %p194 = por %p192, %p193
      %p195 = scmp.ne.s32.totalorder %s181, %s182
      %p196 = scmp.eq.s32.totalorder %s22, 1
      %p197 = por %p195, %p196
      %p199 = scmp.ne.s32.totalorder %s182, %s198
      %p200 = scmp.eq.s32.totalorder %s22, 0
      %p201 = por %p199, %p200
      %p202 = scmp.le.s32.totalorder 1, %s16
      %p203 = scmp.lt.s32.totalorder %s16, 3
      %p204 = pnand %p202, %p203
      %p205 = pneg %p204
      // Predicated region
      $region9: #{temporal_conv_net.5} parent=5 // pred_check
        _
      $region10: #{temporal_conv_net.5} parent=5 // pred_check_branch
        %207 = sbr.rel (%p204) target = $region12
      $region11: #{temporal_conv_net.5} parent=5 // pred_region
        %s208 = ssub.s32 %s16, 1
        // Predicated region
        $region13: #{temporal_conv_net.5} parent=11 // pred_check
          %p209 = pneg %p63
        $region14: #{temporal_conv_net.5} parent=11 // pred_check_branch
          %211 = sbr.rel (%p209) target = $region16
        $region15: #{temporal_conv_net.5} parent=11 // pred_region
          _
        $region16: #{temporal_conv_net.5} parent=11 // pred_fallthru
          _
        // Predicated region
        $region17: #{temporal_conv_net.5} parent=11 // pred_check
          %p212 = pneg %p84
        $region18: #{temporal_conv_net.5} parent=11 // pred_check_branch
          %214 = sbr.rel (%p212) target = $region20
        $region19: #{temporal_conv_net.5} parent=11 // pred_region
          _
        $region20: #{temporal_conv_net.5} parent=11 // pred_fallthru
          _
        // Predicated region
        $region21: #{temporal_conv_net.5} parent=11 // pred_check
          %p215 = pneg %p105
        $region22: #{temporal_conv_net.5} parent=11 // pred_check_branch
          %217 = sbr.rel (%p215) target = $region24
        $region23: #{temporal_conv_net.5} parent=11 // pred_region
          _
        $region24: #{temporal_conv_net.5} parent=11 // pred_fallthru
          _
        // Predicated region
        $region25: #{temporal_conv_net.5} parent=11 // pred_check
          %p218 = pneg %p126
        $region26: #{temporal_conv_net.5} parent=11 // pred_check_branch
          %220 = sbr.rel (%p218) target = $region28
        $region27: #{temporal_conv_net.5} parent=11 // pred_region
          _
        $region28: #{temporal_conv_net.5} parent=11 // pred_fallthru
          _
        // Predicated region
        $region29: #{temporal_conv_net.5} parent=11 // pred_check
          %p221 = pneg %p147
        $region30: #{temporal_conv_net.5} parent=11 // pred_check_branch
          %223 = sbr.rel (%p221) target = $region32
        $region31: #{temporal_conv_net.5} parent=11 // pred_region
          _
        $region32: #{temporal_conv_net.5} parent=11 // pred_fallthru
          _
        // Predicated region
        $region33: #{temporal_conv_net.5} parent=11 // pred_check
          %p224 = pneg %p168
        $region34: #{temporal_conv_net.5} parent=11 // pred_check_branch
          %226 = sbr.rel (%p224) target = $region36
        $region35: #{temporal_conv_net.5} parent=11 // pred_region
          _
        $region36: #{temporal_conv_net.5} parent=11 // pred_fallthru
          _
      $region12: #{temporal_conv_net.5} parent=5 // pred_fallthru
        _
      %p227 = scmp.lt.s32.totalorder %s16, 2
      // Predicated region
      $region37: #{temporal_conv_net.5} parent=5 // pred_check
        %p228 = pneg %p227
      $region38: #{temporal_conv_net.5} parent=5 // pred_check_branch
        %230 = sbr.rel (%p228) target = $region40
      $region39: #{temporal_conv_net.5} parent=5 // pred_region
        // Predicated region
        $region41: #{temporal_conv_net.5} parent=39 // pred_check
          %p231 = pneg %p36
        $region42: #{temporal_conv_net.5} parent=39 // pred_check_branch
          %233 = sbr.rel (%p231) target = $region44
        $region43: #{temporal_conv_net.5} parent=39 // pred_region
          %p234 = scmp.lt.s32.totalorder %s16, 1
          %s235 = scalar_select %p234, %s16, 1
          %s236 = smul.addr %s235, 2
          %s237 = smul.addr %s236, 8
          %s238 = scalar_lea.vmem %s0, %s237
        $region44: #{temporal_conv_net.5} parent=39 // pred_fallthru
          _
      $region40: #{temporal_conv_net.5} parent=5 // pred_fallthru
        _
      %p239 = scmp.le.s32.totalorder 1, %s16
      %p240 = scmp.lt.s32.totalorder %s16, 3
      %p241 = pnand %p239, %p240
      %p242 = pneg %p241
      // Predicated region
      $region45: #{temporal_conv_net.5} parent=5 // pred_check
        _
      $region46: #{temporal_conv_net.5} parent=5 // pred_check_branch
        %244 = sbr.rel (%p241) target = $region48
      $region47: #{temporal_conv_net.5} parent=5 // pred_region
        %s245 = ssub.s32 %s16, 1
        %p246 = scmp.lt.s32.totalorder %s21, 1
        %s247 = scalar_select %p246, %s21, 1
        %s248 = smul.addr %s247, 2
        %s249 = smul.addr %s248, 8
        %s250 = scalar_lea.vmem %s0, %s249
        %p251 = pneg %p42
        %p252 = pneg %p39
        %p253 = pneg %p63
        %p254 = pneg %p60
        %p255 = pneg %p84
        %p256 = pneg %p81
        %p257 = pneg %p105
        %p258 = pneg %p102
        %p259 = pneg %p126
        %p260 = pneg %p123
        %p261 = pneg %p147
        %p262 = pneg %p144
        %p263 = pneg %p168
        %p264 = pneg %p165
        %p265 = pneg %p194
        %p266 = pneg %p191
        %s267 = sand.u32 %s181, 1
        %s268 = scalar_lea.sflag [#allocation3], %s267
        %s269 = sand.u32 %s181, 1
        %s270 = smul.addr %s269, 8
        %s271 = scalar_lea.vmem [#allocation2], %s270
        %p272 = scmp.lt.s32.totalorder %s21, 1
        %s273 = scalar_select %p272, %s21, 1
        %s274 = smul.addr %s273, 2
        %s275 = smul.addr %s274, 8
        %s276 = scalar_lea.vmem %s0, %s275
        %v278 = vld [vmem:[%s276] sm:$0xff]
        %v279 = vld [vmem:[%s276 + $0x8] sm:$0xff]
        %v280 = vpack.c.bf16 %v279, %v278
        %v281 = vld [vmem:[%s1] sm:$0xf]
        %283 = vrot.lane.b32.xlu0 %v280, 8
        %v284 = vpop.permute.xlu0 %283
        %vm285 = vcmask 64512
        %v288 = vsel %vm285, 0, %v284
        %291 = vrot.lane.b32.xlu0 %v288, 124
        %v292 = vpop.permute.xlu0 %291
        %293 = vrot.lane.b32.xlu0 %v284, 124
        %v294 = vpop.permute.xlu0 %293
        %vm295 = vcmask 1014784
        %v296 = vsel %vm295, %v292, %v294
        %298 = vrot.lane.b32.xlu0 %v288, 120
        %v299 = vpop.permute.xlu0 %298
        %300 = vrot.lane.b32.xlu0 %v284, 120
        %v301 = vpop.permute.xlu0 %300
        %vm302 = vcmask 982016
        %v303 = vsel %vm302, %v299, %v301
        %v305 = vld [vmem:[%s2] sm:$0xff]
        %307 = vset.pattern.permute.xlu0 0
        %308 = vperm.xlu0 %307, %v305
        %v309 = vpop.permute.xlu0 %308
        %vm311 = vcmask 392192
        %v313 = vsel %vm311, %v281, 0
        %315 = vmatprep.subr.bf16.mxu0 0
        %316 = vmatpush1.bf16.msra.mxu0 %v288
        %317 = vmatprep.subr.bf16.mxu0 0
        %318 = vmatpush1.bf16.msra.mxu0 %v296
        %319 = vmatprep.subr.bf16.mxu0 0
        %320 = vmatpush1.bf16.msra.mxu0 %v303
        %321 = vmatprep.subr.bf16.mxu0 0
        %322 = vmatpush1.bf16.msra.mxu0 0
        %323 = vmatprep.subr.bf16.mxu0 0
        %324 = vmatpush1.bf16.msra.mxu0 0
        %325 = vmatprep.subr.bf16.mxu0 0
        %326 = vmatpush1.bf16.msra.mxu0 0
        %327 = vmatprep.subr.bf16.mxu0 0
        %328 = vmatpush1.bf16.msra.mxu0 0
        %329 = vmatprep.subr.bf16.mxu0 0
        %330 = vmatpush1.bf16.msra.mxu0 0
        %331 = vmatprep.subr.bf16.mxu0 0
        %332 = vmatpush1.bf16.msra.mxu0 0
        %333 = vmatprep.subr.bf16.mxu0 0
        %334 = vmatpush1.bf16.msra.mxu0 0
        %335 = vmatprep.subr.bf16.mxu0 0
        %336 = vmatpush1.bf16.msra.mxu0 0
        %337 = vmatprep.subr.bf16.mxu0 0
        %338 = vmatpush1.bf16.msra.mxu0 0
        %339 = vmatprep.subr.bf16.mxu0 0
        %340 = vmatpush1.bf16.msra.mxu0 0
        %341 = vmatprep.subr.bf16.mxu0 0
        %342 = vmatpush1.bf16.msra.mxu0 0
        %343 = vmatprep.subr.bf16.mxu0 0
        %344 = vmatpush1.bf16.msra.mxu0 0
        %345 = vmatprep.subr.bf16.mxu0 0
        %346 = vmatpush1.bf16.msra.mxu0 0
        %347 = vmatprep.mubr.bf16.mxu0 0
        %348 = vmatmul.mubr.bf16.gmra.mrb[0].mxu0 %v313
        %v349 = vpop.f32.mrb[0].mxu0
        %v350 = vadd.f32 %v309, %v349
        %v351 = vpop.f32.mrb[0].mxu0
        %v352 = vpop.f32.mrb[0].mxu0
        %v353 = vpop.f32.mrb[0].mxu0
        %354 = vdwg.mxu0
        %v355 = vmax.f32 %v350, 0.0
        %v356 = vld [vmem:[%s3] sm:$0xf]
        %v357 = vpack.c.bf16 %v355, %v355
        %359 = vrot.lane.b32.xlu0 %v357, 8
        %v360 = vpop.permute.xlu0 %359
        %v362 = vsel %vm285, 0, %v360
        %v364 = vrot.slane %v362, 4
        %v365 = vrot.slane %v360, 4
        %366 = vrot.lane.b32.xlu0 %v364, 124
        %v367 = vpop.permute.xlu0 %366
        %368 = vrot.lane.b32.xlu0 %v365, 124
        %v369 = vpop.permute.xlu0 %368
        %v370 = vsel %vm295, %v367, %v369
        %371 = vrot.lane.b32.xlu0 %v362, 120
        %v372 = vpop.permute.xlu0 %371
        %373 = vrot.lane.b32.xlu0 %v360, 120
        %v374 = vpop.permute.xlu0 %373
        %v375 = vsel %vm302, %v372, %v374
        %vm376 = vcmask 1043456
        %v378 = vsel %vm376, %v362, %v370
        %v380 = vld [vmem:[%s4] sm:$0xff]
        %382 = vset.pattern.permute.xlu0 0
        %383 = vperm.xlu0 %382, %v380
        %v384 = vpop.permute.xlu0 %383
        %vm386 = vcmask 195584
        %v388 = vsel %vm386, %v356, 0
        %v391 = vsel %vm376, %v375, 0
        %393 = vmatprep.subr.bf16.mxu0 0
        %394 = vmatpush1.bf16.msra.mxu0 %v378
        %395 = vmatprep.subr.bf16.mxu0 0
        %396 = vmatpush1.bf16.msra.mxu0 %v391
        %397 = vmatprep.subr.bf16.mxu0 0
        %398 = vmatpush1.bf16.msra.mxu0 0
        %399 = vmatprep.subr.bf16.mxu0 0
        %400 = vmatpush1.bf16.msra.mxu0 0
        %401 = vmatprep.subr.bf16.mxu0 0
        %402 = vmatpush1.bf16.msra.mxu0 0
        %403 = vmatprep.subr.bf16.mxu0 0
        %404 = vmatpush1.bf16.msra.mxu0 0
        %405 = vmatprep.subr.bf16.mxu0 0
        %406 = vmatpush1.bf16.msra.mxu0 0
        %407 = vmatprep.subr.bf16.mxu0 0
        %408 = vmatpush1.bf16.msra.mxu0 0
        %409 = vmatprep.subr.bf16.mxu0 0
        %410 = vmatpush1.bf16.msra.mxu0 0
        %411 = vmatprep.subr.bf16.mxu0 0
        %412 = vmatpush1.bf16.msra.mxu0 0
        %413 = vmatprep.subr.bf16.mxu0 0
        %414 = vmatpush1.bf16.msra.mxu0 0
        %415 = vmatprep.subr.bf16.mxu0 0
        %416 = vmatpush1.bf16.msra.mxu0 0
        %417 = vmatprep.subr.bf16.mxu0 0
        %418 = vmatpush1.bf16.msra.mxu0 0
        %419 = vmatprep.subr.bf16.mxu0 0
        %420 = vmatpush1.bf16.msra.mxu0 0
        %421 = vmatprep.subr.bf16.mxu0 0
        %422 = vmatpush1.bf16.msra.mxu0 0
        %423 = vmatprep.subr.bf16.mxu0 0
        %424 = vmatpush1.bf16.msra.mxu0 0
        %425 = vmatprep.mubr.bf16.mxu0 0
        %426 = vmatmul.mubr.bf16.gmra.mrb[0].mxu0 %v388
        %v427 = vpop.f32.mrb[0].mxu0
        %v428 = vadd.f32 %v384, %v427
        %v429 = vpop.f32.mrb[0].mxu0
        %v430 = vpop.f32.mrb[0].mxu0
        %v431 = vpop.f32.mrb[0].mxu0
        %432 = vdwg.mxu0
        %v433 = vmax.f32 %v428, 0.0
        %v434 = vld [vmem:[%s5] sm:$0xf]
        %v435 = vld [vmem:[%s6] sm:$0xff]
        %437 = vset.pattern.permute.xlu0 0
        %438 = vperm.xlu0 %437, %v435
        %v439 = vpop.permute.xlu0 %438
        %vm441 = vcmask 130048
        %v443 = vsel %vm441, %v434, 0
        %445 = vmatprep.subr.bf16.mxu0 0
        %446 = vmatpush1.bf16.msra.mxu0 %v280
        %447 = vmatprep.subr.bf16.mxu0 0
        %448 = vmatpush1.bf16.msra.mxu0 0
        %449 = vmatprep.subr.bf16.mxu0 0
        %450 = vmatpush1.bf16.msra.mxu0 0
        %451 = vmatprep.subr.bf16.mxu0 0
        %452 = vmatpush1.bf16.msra.mxu0 0
        %453 = vmatprep.subr.bf16.mxu0 0
        %454 = vmatpush1.bf16.msra.mxu0 0
        %455 = vmatprep.subr.bf16.mxu0 0
        %456 = vmatpush1.bf16.msra.mxu0 0
        %457 = vmatprep.subr.bf16.mxu0 0
        %458 = vmatpush1.bf16.msra.mxu0 0
        %459 = vmatprep.subr.bf16.mxu0 0
        %460 = vmatpush1.bf16.msra.mxu0 0
        %461 = vmatprep.subr.bf16.mxu0 0
        %462 = vmatpush1.bf16.msra.mxu0 0
        %463 = vmatprep.subr.bf16.mxu0 0
        %464 = vmatpush1.bf16.msra.mxu0 0
        %465 = vmatprep.subr.bf16.mxu0 0
        %466 = vmatpush1.bf16.msra.mxu0 0
        %467 = vmatprep.subr.bf16.mxu0 0
        %468 = vmatpush1.bf16.msra.mxu0 0
        %469 = vmatprep.subr.bf16.mxu0 0
        %470 = vmatpush1.bf16.msra.mxu0 0
        %471 = vmatprep.subr.bf16.mxu0 0
        %472 = vmatpush1.bf16.msra.mxu0 0
        %473 = vmatprep.subr.bf16.mxu0 0
        %474 = vmatpush1.bf16.msra.mxu0 0
        %475 = vmatprep.subr.bf16.mxu0 0
        %476 = vmatpush1.bf16.msra.mxu0 0
        %477 = vmatprep.mubr.bf16.mxu0 0
        %478 = vmatmul.mubr.bf16.gmra.mrb[0].mxu0 %v443
        %v479 = vpop.f32.mrb[0].mxu0
        %v480 = vadd.f32 %v439, %v479
        %v481 = vpop.f32.mrb[0].mxu0
        %v482 = vpop.f32.mrb[0].mxu0
        %v483 = vpop.f32.mrb[0].mxu0
        %484 = vdwg.mxu0
        %v485 = vadd.f32 %v433, %v480
        %v486 = vmax.f32 %v485, 0.0
        %487 = vst [vmem:[%s271] sm:$0xff] %v486
        %s488 = sand.u32 %s181, 1
        %s489 = scalar_lea.sflag [#allocation3], %s488
        %s490 = sand.u32 %s181, 1
        %s491 = smul.addr %s490, 8
        %s492 = scalar_lea.vmem [#allocation2], %s491
        // Predicated region
        $region49: #{temporal_conv_net.5} parent=47 // pred_check
          %p493 = pneg %p191
        $region50: #{temporal_conv_net.5} parent=47 // pred_check_branch
          %495 = sbr.rel (%p493) target = $region52
        $region51: #{temporal_conv_net.5} parent=47 // pred_region
          %s497 = ssub.s32 128, 128
          %498 = vsyncadd %s489, %s497
          %s499 = smul.addr %s21, 128
          %s500 = scalar_lea.hbm %s7, %s499
          %s502 = sshll.u32 %s492, 4
          %s503 = int_to_ptr.vmem [resolvable:$true] %s502
          %505 = dma.vmem_to_hbm [thread:$0]  %s503, 128, %s500, %s489
        $region52: #{temporal_conv_net.5} parent=47 // pred_fallthru
          _
      $region48: #{temporal_conv_net.5} parent=5 // pred_fallthru
        _
      %p506 = scmp.le.s32.totalorder 2, %s16
      // Predicated region
      $region53: #{temporal_conv_net.5} parent=5 // pred_check
        %p507 = pneg %p506
      $region54: #{temporal_conv_net.5} parent=5 // pred_check_branch
        %509 = sbr.rel (%p507) target = $region56
      $region55: #{temporal_conv_net.5} parent=5 // pred_region
        %s510 = ssub.s32 %s16, 2
        // Predicated region
        $region57: #{temporal_conv_net.5} parent=55 // pred_check
          %p511 = pneg %p197
        $region58: #{temporal_conv_net.5} parent=55 // pred_check_branch
          %513 = sbr.rel (%p511) target = $region60
        $region59: #{temporal_conv_net.5} parent=55 // pred_region
          %s514 = sand.u32 %s182, 1
          %s515 = scalar_lea.sflag [#allocation3], %s514
          %s516 = sand.u32 %s182, 1
          %s517 = smul.addr %s516, 8
          %s518 = scalar_lea.vmem [#allocation2], %s517
          %519 = dma.done %s515, 128
        $region60: #{temporal_conv_net.5} parent=55 // pred_fallthru
          _
      $region56: #{temporal_conv_net.5} parent=5 // pred_fallthru
        _
    $region6: #{temporal_conv_net.5} parent=1 // loop_footer
      %s20 = sadd.s32 1, %s16
    $region7: #{temporal_conv_net.5} parent=1 // loop_footer_branch
      %15 = sbr.rel target = $region3
    $region8: #{temporal_conv_net.5} parent=1 // loop_exit
      _
    %520 = vsyncpa [#allocation3], 1
    %s521 = scalar_lea.sflag [#allocation3], 1
    %522 = vsyncpa %s521, 1

</llo_original>
